<compile_context>
chip_gen: v7x
topology: tpu7x:2x2x1
jax: 0.10.0
libtpu: 0.0.40
codegen_flags: <defaults>
</compile_context>

<pallas_src>
import functools

import jax
import jax.numpy as jnp
from jax.experimental import pallas as pl
from jax.experimental.pallas import tpu as pltpu


def _rnn_kernel(x_ref, w_in0_ref, w_h0_ref, b0_ref, w_inr_ref, w_hr_ref,
                br_ref, h_last_ref, h_state_ref, *, seq_len, needs_mask):
    """One grid step == one chunk of t_chunk time steps for one batch block.

    Grid is (batch_blocks [parallel], time_chunks [arbitrary]).  The recurrent
    hidden state is carried across chunks in h_state_ref (constant block index
    along the chunk axis -> resident); within a chunk it stays in vregs.
    """
    c = pl.program_id(1)                       # time-chunk index (sequential)
    t_chunk, bb, l_pad = h_last_ref.shape
    num_layers = h_state_ref.shape[0]
    cdt = w_in0_ref.dtype                      # MXU compute dtype (f32 / bf16)

    # h_init is None in forward() -> zeros before the first time step.
    @pl.when(c == 0)
    def _():
        h_state_ref[...] = jnp.zeros_like(h_state_ref)

    # Layer-0 input projection hoisted over the whole chunk: one
    # (t_chunk*bb, input_dim) @ (input_dim, l_pad) matmul; fused bias
    # (b_in0 + b_h0) added once.  bb % 8 == 0 so the reshape is a free view.
    x2d = x_ref[...].reshape(t_chunk * bb, x_ref.shape[-1]).astype(cdt)
    x_proj = (jnp.dot(x2d, w_in0_ref[...], preferred_element_type=jnp.float32)
              + b0_ref[...])

    # Hoist resident weight/bias loads out of the unrolled time loop (JAX does
    # not CSE these), and pre-broadcast the per-layer fused biases once so no
    # broadcast_in_dim is re-emitted every step.
    w_h0 = w_h0_ref[...]
    w_ins = [w_inr_ref[i] for i in range(num_layers - 1)]
    w_hs = [w_hr_ref[i] for i in range(num_layers - 1)]
    bs = [jnp.broadcast_to(br_ref[i], (bb, l_pad))
          for i in range(num_layers - 1)]

    # Hidden state for this chunk, kept in vregs (f32).
    h = [h_state_ref[i] for i in range(num_layers)]

    outs = []
    for t in range(t_chunk):                    # fully unrolled, static indices
        xp_t = x_proj[t * bb:(t + 1) * bb, :]   # aligned (bb % 8 == 0) view
        # Layer 0: input projection precomputed -> only the recurrent matmul.
        h_new = [jnp.tanh(xp_t + jnp.dot(h[0].astype(cdt), w_h0,
                                         preferred_element_type=jnp.float32))]
        # Layers 1..L-1: two K=l_pad dots into one f32 accumulator (no concat
        # on the recurrent critical path), fused bias (b_in + b_h).
        for i in range(1, num_layers):
            acc = (jnp.dot(h_new[i - 1].astype(cdt), w_ins[i - 1],
                           preferred_element_type=jnp.float32)
                   + jnp.dot(h[i].astype(cdt), w_hs[i - 1],
                             preferred_element_type=jnp.float32)
                   + bs[i - 1])
            h_new.append(jnp.tanh(acc))
        if needs_mask:
            # Tail-padded time steps: freeze the recurrent state so h_last is
            # exactly the state after seq_len real steps.
            valid = (c * t_chunk + t) < seq_len
            h = [jnp.where(valid, hn, ho) for hn, ho in zip(h_new, h)]
        else:
            h = h_new
        outs.append(h[-1])

    # ONE lane-dense store of the whole chunk (last dim = l_pad, multiple of
    # 128 -> unmasked vst), instead of t_chunk small per-step stores.
    h_last_ref[...] = jnp.stack(outs).astype(h_last_ref.dtype)
    # Carry the hidden state to the next chunk (resident block).
    h_state_ref[...] = jnp.stack(h).astype(h_state_ref.dtype)


def _pick_time_chunk(seq_len, max_chunk):
    """Prefer a large exact divisor of seq_len; otherwise use max_chunk and let
    the kernel mask the padded tail (never collapse to tiny chunks)."""
    best = min(seq_len, max_chunk)
    for t in range(best, 0, -1):
        if seq_len % t == 0:
            if 2 * t >= best:
                return t            # good-enough exact divisor, no tail pad
            break
    return best                     # pad + mask the tail in-kernel


def _vmem_limit_bytes(t_chunk, bb, input_dim, l_pad, num_layers, w_itemsize):
    """Real footprint (double-buffered blocks + x_proj) with headroom, capped
    well below v7x's 64 MiB physical VMEM per core."""
    f32 = 4
    chunk_in = t_chunk * bb * input_dim * f32
    chunk_out = t_chunk * bb * l_pad * f32
    state = num_layers * bb * l_pad * f32
    weights = ((input_dim + (2 * num_layers - 1) * l_pad) * l_pad * w_itemsize
               + num_layers * l_pad * f32)
    x_proj = t_chunk * bb * l_pad * f32
    footprint = 2 * (chunk_in + chunk_out + state + weights) + x_proj
    return int(min(max(footprint + (8 << 20), 32 << 20), 48 << 20))


def pack_params(params, num_layers, latent_dim, l_pad, weight_dtype):
    """One-time wrapper-side padding (latent -> l_pad) + bias fusion.  Zero
    padding keeps the math exact: padded lanes of h stay identically 0."""
    w_in0, b_in0, w_inr, b_inr, w_h, b_h = params
    p = l_pad - latent_dim
    w_in0_p = jnp.pad(w_in0, ((0, 0), (0, p))).astype(weight_dtype)
    w_h0_p = jnp.pad(w_h[0], ((0, p), (0, p))).astype(weight_dtype)
    b0_p = jnp.pad(b_in0 + b_h[0], ((0, 0), (0, p))).astype(jnp.float32)
    if num_layers > 1:
        w_inr_p = jnp.pad(w_inr[:num_layers - 1],
                          ((0, 0), (0, p), (0, p))).astype(weight_dtype)
        w_hr_p = jnp.pad(w_h[1:], ((0, 0), (0, p), (0, p))).astype(weight_dtype)
        br_p = jnp.pad(b_inr[:num_layers - 1] + b_h[1:],
                       ((0, 0), (0, 0), (0, p))).astype(jnp.float32)
    else:
        # Dummy (unused) slots so ref shapes stay static when num_layers == 1.
        w_inr_p = jnp.zeros((1, l_pad, l_pad), weight_dtype)
        w_hr_p = jnp.zeros((1, l_pad, l_pad), weight_dtype)
        br_p = jnp.zeros((1, 1, l_pad), jnp.float32)
    return w_in0_p, w_h0_p, b0_p, w_inr_p, w_hr_p, br_p


def rnn_forward(seq, params, num_layers, latent_dim, *, t_chunk=None,
                num_batch_blocks=1, weight_dtype=jnp.float32, max_chunk=32):
    """seq: (seq_len, batch, input_dim) -> (h_last_layer, h_last).

    num_batch_blocks=2 splits the batch across a leading 'parallel' grid axis
    (useful on v7x's two TensorCores); weight_dtype=jnp.bfloat16 runs the MXU
    in bf16 with f32 accumulation / state (validate drift for long sequences).
    """
    seq_len, batch, input_dim = seq.shape

    # MXU/lane-friendly padded sizes.
    l_pad = max(128, pl.cdiv(latent_dim, 128) * 128)
    batch_p = pl.cdiv(batch, 8) * 8

    nb = num_batch_blocks
    if nb < 1 or batch_p % nb != 0 or (batch_p // nb) % 8 != 0:
        nb = 1                       # fall back: keep batch blocks 8-aligned
    bb = batch_p // nb

    if t_chunk is None:
        t_chunk = _pick_time_chunk(seq_len, max_chunk)
        # Keep the double-buffered chunk slabs comfortably inside VMEM.
        while t_chunk > 8 and 2 * t_chunk * bb * 4 * (input_dim + l_pad) > (12 << 20):
            t_chunk = max(8, t_chunk // 2)
    padded_seq_len = pl.cdiv(seq_len, t_chunk) * t_chunk
    num_chunks = padded_seq_len // t_chunk

    seq_p = seq.astype(jnp.float32)
    if padded_seq_len != seq_len or batch_p != batch:
        seq_p = jnp.pad(seq_p, ((0, padded_seq_len - seq_len),
                                (0, batch_p - batch), (0, 0)))

    w_in0, w_h0, b0, w_inr, w_hr, br = pack_params(
        params, num_layers, latent_dim, l_pad, weight_dtype)

    kernel = functools.partial(_rnn_kernel, seq_len=seq_len,
                               needs_mask=(padded_seq_len != seq_len))

    def full_spec(shape):
        n = len(shape)
        return pl.BlockSpec(shape, lambda p, c, _n=n: (0,) * _n)

    w_itemsize = jnp.finfo(weight_dtype).bits // 8

    h_ll_p, h_last_p = pl.pallas_call(
        kernel,
        out_shape=(
            jax.ShapeDtypeStruct((padded_seq_len, batch_p, l_pad), jnp.float32),
            jax.ShapeDtypeStruct((num_layers, batch_p, l_pad), jnp.float32),
        ),
        grid_spec=pltpu.PrefetchScalarGridSpec(
            num_scalar_prefetch=0,
            grid=(nb, num_chunks),
            in_specs=[
                # one chunk of time steps x one batch block per grid iteration
                pl.BlockSpec((t_chunk, bb, input_dim), lambda p, c: (c, p, 0)),
                # weights/biases: same block every iteration (resident)
                full_spec(w_in0.shape),
                full_spec(w_h0.shape),
                full_spec(b0.shape),
                full_spec(w_inr.shape),
                full_spec(w_hr.shape),
                full_spec(br.shape),
            ],
            out_specs=[
                pl.BlockSpec((t_chunk, bb, l_pad), lambda p, c: (c, p, 0)),
                # constant block index along the chunk axis -> resident state
                pl.BlockSpec((num_layers, bb, l_pad), lambda p, c: (0, p, 0)),
            ],
        ),
        compiler_params=pltpu.CompilerParams(
            dimension_semantics=("parallel", "arbitrary"),
            vmem_limit_bytes=_vmem_limit_bytes(
                t_chunk, bb, input_dim, l_pad, num_layers, w_itemsize)),
    )(seq_p, w_in0, w_h0, b0, w_inr, w_hr, br)

    # Strip the wrapper-side padding (time tail, batch pad, latent pad).
    h_last_layer = h_ll_p[:seq_len, :batch, :latent_dim]
    h_last = h_last_p[:, :batch, :latent_dim]
    return h_last_layer, h_last


def rnn_forward_ref(seq, params, num_layers, latent_dim):
    """Pure-JAX reference mirroring the PyTorch forward()."""
    w_in0, b_in0, w_inr, b_inr, w_h, b_h = params
    seq_len, batch, _ = seq.shape
    h = jnp.zeros((num_layers, batch, latent_dim), jnp.float32)
    last_layer = []
    for t in range(seq_len):
        new_h = []
        for i in range(num_layers):
            inp = seq[t] if i == 0 else new_h[i - 1]
            w_in = w_in0 if i == 0 else w_inr[i - 1]
            b_in = b_in0 if i == 0 else b_inr[i - 1]
            hi = jnp.tanh(inp @ w_in + b_in + h[i] @ w_h[i] + b_h[i])
            new_h.append(hi)
        h = jnp.stack(new_h)
        last_layer.append(new_h[-1])
    return jnp.stack(last_layer), h


def init_params(key, input_dim, latent_dim, num_layers):
    """Deterministic init matching nn.Linear shapes (uniform +-1/sqrt(fan_in))."""
    ks = jax.random.split(key, 6)

    def unif(k, shape, fan_in):
        bound = 1.0 / jnp.sqrt(jnp.float32(fan_in))
        return jax.random.uniform(k, shape, jnp.float32, -bound, bound)

    w_in0 = unif(ks[0], (input_dim, latent_dim), input_dim)
    b_in0 = unif(ks[1], (1, latent_dim), input_dim)
    n_rest = max(num_layers - 1, 1)  # dummy slot if num_layers == 1 (unused)
    w_inr = unif(ks[2], (n_rest, latent_dim, latent_dim), latent_dim)
    b_inr = unif(ks[3], (n_rest, 1, latent_dim), latent_dim)
    w_h = unif(ks[4], (num_layers, latent_dim, latent_dim), latent_dim)
    b_h = unif(ks[5], (num_layers, 1, latent_dim), latent_dim)
    return (w_in0, b_in0, w_inr, b_inr, w_h, b_h)


if __name__ == "__main__":
    key = jax.random.PRNGKey(0)
    k_seq, k_par, k_seq2, k_par2 = jax.random.split(key, 4)

    # --- Config 1: small demo shapes, exact f32 path ---------------------
    seq_len, batch, input_dim, latent_dim, num_layers = 8, 8, 16, 32, 2
    seq = jax.random.normal(k_seq, (seq_len, batch, input_dim), jnp.float32)
    params = init_params(k_par, input_dim, latent_dim, num_layers)

    h_ll, h_last = jax.block_until_ready(
        rnn_forward(seq, params, num_layers, latent_dim))
    ref_ll, ref_last = rnn_forward_ref(seq, params, num_layers, latent_dim)
    assert h_ll.shape == (seq_len, batch, latent_dim)
    assert h_last.shape == (num_layers, batch, latent_dim)
    assert jnp.allclose(h_ll, ref_ll, atol=1e-5, rtol=1e-5)
    assert jnp.allclose(h_last, ref_last, atol=1e-5, rtol=1e-5)

    # bf16-weight MXU path (deliberately loosened tolerance).
    h_ll_bf, h_last_bf = jax.block_until_ready(
        rnn_forward(seq, params, num_layers, latent_dim,
                    weight_dtype=jnp.bfloat16))
    assert jnp.allclose(h_ll_bf, ref_ll, atol=1e-1)
    assert jnp.allclose(h_last_bf, ref_last, atol=1e-1)

    # --- Config 2: exercises the batch split (v7x 2-TC path), the masked
    #     sequence tail (seq_len=10 with t_chunk=4 -> padded to 12), three
    #     layers, and non-multiple-of-128 latent (padded to 128). ----------
    seq_len2, batch2, input_dim2, latent2, layers2 = 10, 16, 24, 40, 3
    seq2 = jax.random.normal(k_seq2, (seq_len2, batch2, input_dim2),
                             jnp.float32)
    params2 = init_params(k_par2, input_dim2, latent2, layers2)
    h_ll2, h_last2 = jax.block_until_ready(
        rnn_forward(seq2, params2, layers2, latent2,
                    t_chunk=4, num_batch_blocks=2))
    ref_ll2, ref_last2 = rnn_forward_ref(seq2, params2, layers2, latent2)
    assert h_ll2.shape == (seq_len2, batch2, latent2)
    assert h_last2.shape == (layers2, batch2, latent2)
    assert jnp.allclose(h_ll2, ref_ll2, atol=1e-5, rtol=1e-5)
    assert jnp.allclose(h_last2, ref_last2, atol=1e-5, rtol=1e-5)

    print("KERNEL_OK")
</pallas_src>

<mosaic_0001>
module attributes {stable_mosaic.version = 11 : i64} {
  func.func @_rnn_kernel(%arg0: i32, %arg1: i32, %arg2: memref<8x8x16xf32, #tpu.memory_space<vmem>>, %arg3: memref<16x128xf32, #tpu.memory_space<vmem>>, %arg4: memref<128x128xf32, #tpu.memory_space<vmem>>, %arg5: memref<1x128xf32, #tpu.memory_space<vmem>>, %arg6: memref<1x128x128xf32, #tpu.memory_space<vmem>>, %arg7: memref<1x128x128xf32, #tpu.memory_space<vmem>>, %arg8: memref<1x1x128xf32, #tpu.memory_space<vmem>>, %arg9: memref<8x8x128xf32, #tpu.memory_space<vmem>>, %arg10: memref<2x8x128xf32, #tpu.memory_space<vmem>>) attributes {dimension_semantics = [#tpu.dimension_semantics<parallel>, #tpu.dimension_semantics<arbitrary>], iteration_bounds = array<i64: 1, 1>, scalar_prefetch = 0 : i64, scratch_operands = 0 : i64, tpu.core_type = #tpu.core_type<tc>, window_params = [{transform_indices = @transform_0, window_bounds = array<i64: 8, 8, 16>}, {pipeline_mode = #tpu.pipeline_mode<synchronous>, transform_indices = @transform_1, window_bounds = array<i64: 16, 128>}, {pipeline_mode = #tpu.pipeline_mode<synchronous>, transform_indices = @transform_2, window_bounds = array<i64: 128, 128>}, {pipeline_mode = #tpu.pipeline_mode<synchronous>, transform_indices = @transform_3, window_bounds = array<i64: 1, 128>}, {pipeline_mode = #tpu.pipeline_mode<synchronous>, transform_indices = @transform_4, window_bounds = array<i64: 1, 128, 128>}, {pipeline_mode = #tpu.pipeline_mode<synchronous>, transform_indices = @transform_5, window_bounds = array<i64: 1, 128, 128>}, {pipeline_mode = #tpu.pipeline_mode<synchronous>, transform_indices = @transform_6, window_bounds = array<i64: 1, 1, 128>}, {transform_indices = @transform_7, window_bounds = array<i64: 8, 8, 128>}, {transform_indices = @transform_8, window_bounds = array<i64: 2, 8, 128>}]} {
    %c0_i32 = arith.constant 0 : i32
    %0 = arith.cmpi eq, %arg1, %c0_i32 : i32
    %1 = arith.extui %0 : i1 to i32
    %c0_i32_0 = arith.constant 0 : i32
    %2 = arith.cmpi ne, %1, %c0_i32_0 : i32
    scf.if %2 {
      %cst_53 = arith.constant 0.000000e+00 : f32
      %109 = vector.broadcast %cst_53 : f32 to vector<2x8x128xf32>
      %c0_54 = arith.constant 0 : index
      %c0_55 = arith.constant 0 : index
      %c0_56 = arith.constant 0 : index
      %110 = vector.load %arg10[%c0_54, %c0_55, %c0_56] : memref<2x8x128xf32, #tpu.memory_space<vmem>>, vector<2x8x128xf32>
      tpu.vector_store %arg10[%c0_54, %c0_55, %c0_56], %109 {strides = array<i32>} : memref<2x8x128xf32, #tpu.memory_space<vmem>>, vector<2x8x128xf32>,
    } else {
    }
    %c0 = arith.constant 0 : index
    %c0_1 = arith.constant 0 : index
    %c0_2 = arith.constant 0 : index
    %3 = vector.load %arg2[%c0, %c0_1, %c0_2] : memref<8x8x16xf32, #tpu.memory_space<vmem>>, vector<8x8x16xf32>
    %4 = vector.shape_cast %3 : vector<8x8x16xf32> to vector<64x16xf32>
    %c0_3 = arith.constant 0 : index
    %c0_4 = arith.constant 0 : index
    %5 = vector.load %arg3[%c0_3, %c0_4] : memref<16x128xf32, #tpu.memory_space<vmem>>, vector<16x128xf32>
    %cst = arith.constant dense<0.000000e+00> : vector<64x128xf32>
    %6 = tpu.matmul %4, %5, %cst {dimension_numbers = #tpu.dot_dimension_numbers<[1], [0], [0], [1], [0, 0, 1, 1], [], []>} : vector<64x16xf32>, vector<16x128xf32>, vector<64x128xf32> -> vector<64x128xf32>
    %c0_5 = arith.constant 0 : index
    %c0_6 = arith.constant 0 : index
    %7 = vector.load %arg5[%c0_5, %c0_6] : memref<1x128xf32, #tpu.memory_space<vmem>>, vector<1x128xf32>
    %8 = vector.broadcast %7 : vector<1x128xf32> to vector<64x128xf32>
    %9 = arith.addf %6, %8 : vector<64x128xf32>
    %c0_7 = arith.constant 0 : index
    %c0_8 = arith.constant 0 : index
    %10 = vector.load %arg4[%c0_7, %c0_8] : memref<128x128xf32, #tpu.memory_space<vmem>>, vector<128x128xf32>
    %c0_9 = arith.constant 0 : index
    %c0_10 = arith.constant 0 : index
    %c0_11 = arith.constant 0 : index
    %11 = vector.load %arg6[%c0_9, %c0_10, %c0_11] : memref<1x128x128xf32, #tpu.memory_space<vmem>>, vector<1x128x128xf32>
    %12 = vector.shape_cast %11 : vector<1x128x128xf32> to vector<128x128xf32>
    %c0_12 = arith.constant 0 : index
    %c0_13 = arith.constant 0 : index
    %c0_14 = arith.constant 0 : index
    %13 = vector.load %arg7[%c0_12, %c0_13, %c0_14] : memref<1x128x128xf32, #tpu.memory_space<vmem>>, vector<1x128x128xf32>
    %14 = vector.shape_cast %13 : vector<1x128x128xf32> to vector<128x128xf32>
    %c0_15 = arith.constant 0 : index
    %c0_16 = arith.constant 0 : index
    %c0_17 = arith.constant 0 : index
    %15 = vector.load %arg8[%c0_15, %c0_16, %c0_17] : memref<1x1x128xf32, #tpu.memory_space<vmem>>, vector<1x1x128xf32>
    %16 = vector.shape_cast %15 : vector<1x1x128xf32> to vector<1x128xf32>
    %17 = vector.shape_cast %16 : vector<1x128xf32> to vector<1x128xf32>
    %18 = vector.broadcast %17 : vector<1x128xf32> to vector<8x128xf32>
    %c0_18 = arith.constant 0 : index
    %c0_19 = arith.constant 0 : index
    %c0_20 = arith.constant 0 : index
    %19 = vector.load %arg10[%c0_18, %c0_19, %c0_20] : memref<2x8x128xf32, #tpu.memory_space<vmem>>, vector<1x8x128xf32>
    %20 = vector.shape_cast %19 : vector<1x8x128xf32> to vector<8x128xf32>
    %c1 = arith.constant 1 : index
    %c0_21 = arith.constant 0 : index
    %c0_22 = arith.constant 0 : index
    %21 = vector.load %arg10[%c1, %c0_21, %c0_22] : memref<2x8x128xf32, #tpu.memory_space<vmem>>, vector<1x8x128xf32>
    %22 = vector.shape_cast %21 : vector<1x8x128xf32> to vector<8x128xf32>
    %23 = vector.extract_strided_slice %9 {offsets = [0, 0], sizes = [8, 128], strides = [1, 1]} : vector<64x128xf32> to vector<8x128xf32>
    %cst_23 = arith.constant dense<0.000000e+00> : vector<8x128xf32>
    %24 = tpu.matmul %20, %10, %cst_23 {dimension_numbers = #tpu.dot_dimension_numbers<[1], [0], [0], [1], [0, 0, 1, 1], [], []>} : vector<8x128xf32>, vector<128x128xf32>, vector<8x128xf32> -> vector<8x128xf32>
    %25 = arith.addf %23, %24 : vector<8x128xf32>
    %26 = math.tanh %25 : vector<8x128xf32>
    %cst_24 = arith.constant dense<0.000000e+00> : vector<8x128xf32>
    %27 = tpu.matmul %26, %12, %cst_24 {dimension_numbers = #tpu.dot_dimension_numbers<[1], [0], [0], [1], [0, 0, 1, 1], [], []>} : vector<8x128xf32>, vector<128x128xf32>, vector<8x128xf32> -> vector<8x128xf32>
    %cst_25 = arith.constant dense<0.000000e+00> : vector<8x128xf32>
    %28 = tpu.matmul %22, %14, %cst_25 {dimension_numbers = #tpu.dot_dimension_numbers<[1], [0], [0], [1], [0, 0, 1, 1], [], []>} : vector<8x128xf32>, vector<128x128xf32>, vector<8x128xf32> -> vector<8x128xf32>
    %29 = arith.addf %27, %28 : vector<8x128xf32>
    %30 = arith.addf %29, %18 : vector<8x128xf32>
    %31 = math.tanh %30 : vector<8x128xf32>
    %32 = vector.extract_strided_slice %9 {offsets = [8, 0], sizes = [8, 128], strides = [1, 1]} : vector<64x128xf32> to vector<8x128xf32>
    %cst_26 = arith.constant dense<0.000000e+00> : vector<8x128xf32>
    %33 = tpu.matmul %26, %10, %cst_26 {dimension_numbers = #tpu.dot_dimension_numbers<[1], [0], [0], [1], [0, 0, 1, 1], [], []>} : vector<8x128xf32>, vector<128x128xf32>, vector<8x128xf32> -> vector<8x128xf32>
    %34 = arith.addf %32, %33 : vector<8x128xf32>
    %35 = math.tanh %34 : vector<8x128xf32>
    %cst_27 = arith.constant dense<0.000000e+00> : vector<8x128xf32>
    %36 = tpu.matmul %35, %12, %cst_27 {dimension_numbers = #tpu.dot_dimension_numbers<[1], [0], [0], [1], [0, 0, 1, 1], [], []>} : vector<8x128xf32>, vector<128x128xf32>, vector<8x128xf32> -> vector<8x128xf32>
    %cst_28 = arith.constant dense<0.000000e+00> : vector<8x128xf32>
    %37 = tpu.matmul %31, %14, %cst_28 {dimension_numbers = #tpu.dot_dimension_numbers<[1], [0], [0], [1], [0, 0, 1, 1], [], []>} : vector<8x128xf32>, vector<128x128xf32>, vector<8x128xf32> -> vector<8x128xf32>
    %38 = arith.addf %36, %37 : vector<8x128xf32>
    %39 = arith.addf %38, %18 : vector<8x128xf32>
    %40 = math.tanh %39 : vector<8x128xf32>
    %41 = vector.extract_strided_slice %9 {offsets = [16, 0], sizes = [8, 128], strides = [1, 1]} : vector<64x128xf32> to vector<8x128xf32>
    %cst_29 = arith.constant dense<0.000000e+00> : vector<8x128xf32>
    %42 = tpu.matmul %35, %10, %cst_29 {dimension_numbers = #tpu.dot_dimension_numbers<[1], [0], [0], [1], [0, 0, 1, 1], [], []>} : vector<8x128xf32>, vector<128x128xf32>, vector<8x128xf32> -> vector<8x128xf32>
    %43 = arith.addf %41, %42 : vector<8x128xf32>
    %44 = math.tanh %43 : vector<8x128xf32>
    %cst_30 = arith.constant dense<0.000000e+00> : vector<8x128xf32>
    %45 = tpu.matmul %44, %12, %cst_30 {dimension_numbers = #tpu.dot_dimension_numbers<[1], [0], [0], [1], [0, 0, 1, 1], [], []>} : vector<8x128xf32>, vector<128x128xf32>, vector<8x128xf32> -> vector<8x128xf32>
    %cst_31 = arith.constant dense<0.000000e+00> : vector<8x128xf32>
    %46 = tpu.matmul %40, %14, %cst_31 {dimension_numbers = #tpu.dot_dimension_numbers<[1], [0], [0], [1], [0, 0, 1, 1], [], []>} : vector<8x128xf32>, vector<128x128xf32>, vector<8x128xf32> -> vector<8x128xf32>
    %47 = arith.addf %45, %46 : vector<8x128xf32>
    %48 = arith.addf %47, %18 : vector<8x128xf32>
    %49 = math.tanh %48 : vector<8x128xf32>
    %50 = vector.extract_strided_slice %9 {offsets = [24, 0], sizes = [8, 128], strides = [1, 1]} : vector<64x128xf32> to vector<8x128xf32>
    %cst_32 = arith.constant dense<0.000000e+00> : vector<8x128xf32>
    %51 = tpu.matmul %44, %10, %cst_32 {dimension_numbers = #tpu.dot_dimension_numbers<[1], [0], [0], [1], [0, 0, 1, 1], [], []>} : vector<8x128xf32>, vector<128x128xf32>, vector<8x128xf32> -> vector<8x128xf32>
    %52 = arith.addf %50, %51 : vector<8x128xf32>
    %53 = math.tanh %52 : vector<8x128xf32>
    %cst_33 = arith.constant dense<0.000000e+00> : vector<8x128xf32>
    %54 = tpu.matmul %53, %12, %cst_33 {dimension_numbers = #tpu.dot_dimension_numbers<[1], [0], [0], [1], [0, 0, 1, 1], [], []>} : vector<8x128xf32>, vector<128x128xf32>, vector<8x128xf32> -> vector<8x128xf32>
    %cst_34 = arith.constant dense<0.000000e+00> : vector<8x128xf32>
    %55 = tpu.matmul %49, %14, %cst_34 {dimension_numbers = #tpu.dot_dimension_numbers<[1], [0], [0], [1], [0, 0, 1, 1], [], []>} : vector<8x128xf32>, vector<128x128xf32>, vector<8x128xf32> -> vector<8x128xf32>
    %56 = arith.addf %54, %55 : vector<8x128xf32>
    %57 = arith.addf %56, %18 : vector<8x128xf32>
    %58 = math.tanh %57 : vector<8x128xf32>
    %59 = vector.extract_strided_slice %9 {offsets = [32, 0], sizes = [8, 128], strides = [1, 1]} : vector<64x128xf32> to vector<8x128xf32>
    %cst_35 = arith.constant dense<0.000000e+00> : vector<8x128xf32>
    %60 = tpu.matmul %53, %10, %cst_35 {dimension_numbers = #tpu.dot_dimension_numbers<[1], [0], [0], [1], [0, 0, 1, 1], [], []>} : vector<8x128xf32>, vector<128x128xf32>, vector<8x128xf32> -> vector<8x128xf32>
    %61 = arith.addf %59, %60 : vector<8x128xf32>
    %62 = math.tanh %61 : vector<8x128xf32>
    %cst_36 = arith.constant dense<0.000000e+00> : vector<8x128xf32>
    %63 = tpu.matmul %62, %12, %cst_36 {dimension_numbers = #tpu.dot_dimension_numbers<[1], [0], [0], [1], [0, 0, 1, 1], [], []>} : vector<8x128xf32>, vector<128x128xf32>, vector<8x128xf32> -> vector<8x128xf32>
    %cst_37 = arith.constant dense<0.000000e+00> : vector<8x128xf32>
    %64 = tpu.matmul %58, %14, %cst_37 {dimension_numbers = #tpu.dot_dimension_numbers<[1], [0], [0], [1], [0, 0, 1, 1], [], []>} : vector<8x128xf32>, vector<128x128xf32>, vector<8x128xf32> -> vector<8x128xf32>
    %65 = arith.addf %63, %64 : vector<8x128xf32>
    %66 = arith.addf %65, %18 : vector<8x128xf32>
    %67 = math.tanh %66 : vector<8x128xf32>
    %68 = vector.extract_strided_slice %9 {offsets = [40, 0], sizes = [8, 128], strides = [1, 1]} : vector<64x128xf32> to vector<8x128xf32>
    %cst_38 = arith.constant dense<0.000000e+00> : vector<8x128xf32>
    %69 = tpu.matmul %62, %10, %cst_38 {dimension_numbers = #tpu.dot_dimension_numbers<[1], [0], [0], [1], [0, 0, 1, 1], [], []>} : vector<8x128xf32>, vector<128x128xf32>, vector<8x128xf32> -> vector<8x128xf32>
    %70 = arith.addf %68, %69 : vector<8x128xf32>
    %71 = math.tanh %70 : vector<8x128xf32>
    %cst_39 = arith.constant dense<0.000000e+00> : vector<8x128xf32>
    %72 = tpu.matmul %71, %12, %cst_39 {dimension_numbers = #tpu.dot_dimension_numbers<[1], [0], [0], [1], [0, 0, 1, 1], [], []>} : vector<8x128xf32>, vector<128x128xf32>, vector<8x128xf32> -> vector<8x128xf32>
    %cst_40 = arith.constant dense<0.000000e+00> : vector<8x128xf32>
    %73 = tpu.matmul %67, %14, %cst_40 {dimension_numbers = #tpu.dot_dimension_numbers<[1], [0], [0], [1], [0, 0, 1, 1], [], []>} : vector<8x128xf32>, vector<128x128xf32>, vector<8x128xf32> -> vector<8x128xf32>
    %74 = arith.addf %72, %73 : vector<8x128xf32>
    %75 = arith.addf %74, %18 : vector<8x128xf32>
    %76 = math.tanh %75 : vector<8x128xf32>
    %77 = vector.extract_strided_slice %9 {offsets = [48, 0], sizes = [8, 128], strides = [1, 1]} : vector<64x128xf32> to vector<8x128xf32>
    %cst_41 = arith.constant dense<0.000000e+00> : vector<8x128xf32>
    %78 = tpu.matmul %71, %10, %cst_41 {dimension_numbers = #tpu.dot_dimension_numbers<[1], [0], [0], [1], [0, 0, 1, 1], [], []>} : vector<8x128xf32>, vector<128x128xf32>, vector<8x128xf32> -> vector<8x128xf32>
    %79 = arith.addf %77, %78 : vector<8x128xf32>
    %80 = math.tanh %79 : vector<8x128xf32>
    %cst_42 = arith.constant dense<0.000000e+00> : vector<8x128xf32>
    %81 = tpu.matmul %80, %12, %cst_42 {dimension_numbers = #tpu.dot_dimension_numbers<[1], [0], [0], [1], [0, 0, 1, 1], [], []>} : vector<8x128xf32>, vector<128x128xf32>, vector<8x128xf32> -> vector<8x128xf32>
    %cst_43 = arith.constant dense<0.000000e+00> : vector<8x128xf32>
    %82 = tpu.matmul %76, %14, %cst_43 {dimension_numbers = #tpu.dot_dimension_numbers<[1], [0], [0], [1], [0, 0, 1, 1], [], []>} : vector<8x128xf32>, vector<128x128xf32>, vector<8x128xf32> -> vector<8x128xf32>
    %83 = arith.addf %81, %82 : vector<8x128xf32>
    %84 = arith.addf %83, %18 : vector<8x128xf32>
    %85 = math.tanh %84 : vector<8x128xf32>
    %86 = vector.extract_strided_slice %9 {offsets = [56, 0], sizes = [8, 128], strides = [1, 1]} : vector<64x128xf32> to vector<8x128xf32>
    %cst_44 = arith.constant dense<0.000000e+00> : vector<8x128xf32>
    %87 = tpu.matmul %80, %10, %cst_44 {dimension_numbers = #tpu.dot_dimension_numbers<[1], [0], [0], [1], [0, 0, 1, 1], [], []>} : vector<8x128xf32>, vector<128x128xf32>, vector<8x128xf32> -> vector<8x128xf32>
    %88 = arith.addf %86, %87 : vector<8x128xf32>
    %89 = math.tanh %88 : vector<8x128xf32>
    %cst_45 = arith.constant dense<0.000000e+00> : vector<8x128xf32>
    %90 = tpu.matmul %89, %12, %cst_45 {dimension_numbers = #tpu.dot_dimension_numbers<[1], [0], [0], [1], [0, 0, 1, 1], [], []>} : vector<8x128xf32>, vector<128x128xf32>, vector<8x128xf32> -> vector<8x128xf32>
    %cst_46 = arith.constant dense<0.000000e+00> : vector<8x128xf32>
    %91 = tpu.matmul %85, %14, %cst_46 {dimension_numbers = #tpu.dot_dimension_numbers<[1], [0], [0], [1], [0, 0, 1, 1], [], []>} : vector<8x128xf32>, vector<128x128xf32>, vector<8x128xf32> -> vector<8x128xf32>
    %92 = arith.addf %90, %91 : vector<8x128xf32>
    %93 = arith.addf %92, %18 : vector<8x128xf32>
    %94 = math.tanh %93 : vector<8x128xf32>
    %95 = vector.shape_cast %31 : vector<8x128xf32> to vector<1x8x128xf32>
    %96 = vector.shape_cast %40 : vector<8x128xf32> to vector<1x8x128xf32>
    %97 = vector.shape_cast %49 : vector<8x128xf32> to vector<1x8x128xf32>
    %98 = vector.shape_cast %58 : vector<8x128xf32> to vector<1x8x128xf32>
    %99 = vector.shape_cast %67 : vector<8x128xf32> to vector<1x8x128xf32>
    %100 = vector.shape_cast %76 : vector<8x128xf32> to vector<1x8x128xf32>
    %101 = vector.shape_cast %85 : vector<8x128xf32> to vector<1x8x128xf32>
    %102 = vector.shape_cast %94 : vector<8x128xf32> to vector<1x8x128xf32>
    %103 = tpu.concatenate %95, %96, %97, %98, %99, %100, %101, %102 in 0 : vector<1x8x128xf32>, vector<1x8x128xf32>, vector<1x8x128xf32>, vector<1x8x128xf32>, vector<1x8x128xf32>, vector<1x8x128xf32>, vector<1x8x128xf32>, vector<1x8x128xf32> -> vector<8x8x128xf32>
    %c0_47 = arith.constant 0 : index
    %c0_48 = arith.constant 0 : index
    %c0_49 = arith.constant 0 : index
    %104 = vector.load %arg9[%c0_47, %c0_48, %c0_49] : memref<8x8x128xf32, #tpu.memory_space<vmem>>, vector<8x8x128xf32>
    tpu.vector_store %arg9[%c0_47, %c0_48, %c0_49], %103 {strides = array<i32>} : memref<8x8x128xf32, #tpu.memory_space<vmem>>, vector<8x8x128xf32>,
    %105 = vector.shape_cast %89 : vector<8x128xf32> to vector<1x8x128xf32>
    %106 = vector.shape_cast %94 : vector<8x128xf32> to vector<1x8x128xf32>
    %107 = tpu.concatenate %105, %106 in 0 : vector<1x8x128xf32>, vector<1x8x128xf32> -> vector<2x8x128xf32>
    %c0_50 = arith.constant 0 : index
    %c0_51 = arith.constant 0 : index
    %c0_52 = arith.constant 0 : index
    %108 = vector.load %arg10[%c0_50, %c0_51, %c0_52] : memref<2x8x128xf32, #tpu.memory_space<vmem>>, vector<2x8x128xf32>
    tpu.vector_store %arg10[%c0_50, %c0_51, %c0_52], %107 {strides = array<i32>} : memref<2x8x128xf32, #tpu.memory_space<vmem>>, vector<2x8x128xf32>,
    return
  }
  func.func @transform_0(%arg0: i32, %arg1: i32) -> (i32, i32, i32) {
    %c0_i32 = arith.constant 0 : i32
    %c0_i32_0 = arith.constant 0 : i32
    return %arg1, %arg0, %c0_i32 : i32, i32, i32
  }
  func.func @transform_1(%arg0: i32, %arg1: i32) -> (i32, i32) {
    %c0_i32 = arith.constant 0 : i32
    %c0_i32_0 = arith.constant 0 : i32
    %c0_i32_1 = arith.constant 0 : i32
    return %c0_i32, %c0_i32_0 : i32, i32
  }
  func.func @transform_2(%arg0: i32, %arg1: i32) -> (i32, i32) {
    %c0_i32 = arith.constant 0 : i32
    %c0_i32_0 = arith.constant 0 : i32
    %c0_i32_1 = arith.constant 0 : i32
    return %c0_i32, %c0_i32_0 : i32, i32
  }
  func.func @transform_3(%arg0: i32, %arg1: i32) -> (i32, i32) {
    %c0_i32 = arith.constant 0 : i32
    %c0_i32_0 = arith.constant 0 : i32
    %c0_i32_1 = arith.constant 0 : i32
    return %c0_i32, %c0_i32_0 : i32, i32
  }
  func.func @transform_4(%arg0: i32, %arg1: i32) -> (i32, i32, i32) {
    %c0_i32 = arith.constant 0 : i32
    %c0_i32_0 = arith.constant 0 : i32
    %c0_i32_1 = arith.constant 0 : i32
    %c0_i32_2 = arith.constant 0 : i32
    return %c0_i32, %c0_i32_0, %c0_i32_1 : i32, i32, i32
  }
  func.func @transform_5(%arg0: i32, %arg1: i32) -> (i32, i32, i32) {
    %c0_i32 = arith.constant 0 : i32
    %c0_i32_0 = arith.constant 0 : i32
    %c0_i32_1 = arith.constant 0 : i32
    %c0_i32_2 = arith.constant 0 : i32
    return %c0_i32, %c0_i32_0, %c0_i32_1 : i32, i32, i32
  }
  func.func @transform_6(%arg0: i32, %arg1: i32) -> (i32, i32, i32) {
    %c0_i32 = arith.constant 0 : i32
    %c0_i32_0 = arith.constant 0 : i32
    %c0_i32_1 = arith.constant 0 : i32
    %c0_i32_2 = arith.constant 0 : i32
    return %c0_i32, %c0_i32_0, %c0_i32_1 : i32, i32, i32
  }
  func.func @transform_7(%arg0: i32, %arg1: i32) -> (i32, i32, i32) {
    %c0_i32 = arith.constant 0 : i32
    %c0_i32_0 = arith.constant 0 : i32
    return %arg1, %arg0, %c0_i32 : i32, i32, i32
  }
  func.func @transform_8(%arg0: i32, %arg1: i32) -> (i32, i32, i32) {
    %c0_i32 = arith.constant 0 : i32
    %c0_i32_0 = arith.constant 0 : i32
    %c0_i32_1 = arith.constant 0 : i32
    return %c0_i32, %arg0, %c0_i32_0 : i32, i32, i32
  }
}

</mosaic_0001>

<llo_original>
// kernel: tpu_custom_call.1
$region0: #{tpu_custom_call.1}
  #allocation0 [shape = 'u32[]', space=smem, size = 0x4, offset = 0x4, fixed_abs, tag = 'smem constant byte address 0x4 - core index']
  #allocation1 [shape = 'u32[144,128]{1,0:T(1,128)}', space=vmem, size = 0x12000, scoped, tag = 'internal scratch']
  %s0 = inlined_call_operand.hbm [shape: f32[8,8,16], index: 0, kind: input, shape index: {}]
  %s1 = inlined_call_operand.hbm [shape: f32[16,128], index: 1, kind: input, shape index: {}]
  %s2 = inlined_call_operand.hbm [shape: f32[128,128], index: 2, kind: input, shape index: {}]
  %s3 = inlined_call_operand.vmem [shape: f32[1,128], index: 3, kind: input, shape index: {}]
  %s4 = inlined_call_operand.hbm [shape: f32[1,128,128], index: 4, kind: input, shape index: {}]
  %s5 = inlined_call_operand.hbm [shape: f32[1,128,128], index: 5, kind: input, shape index: {}]
  %s6 = inlined_call_operand.vmem [shape: f32[1,1,128], index: 6, kind: input, shape index: {}]
  %s7 = inlined_call_operand.hbm [shape: f32[8,8,128], index: 7, kind: output, shape index: {0}]
  %s8 = inlined_call_operand.hbm [shape: f32[2,8,128], index: 8, kind: output, shape index: {1}]
  %9 = xla_tuple %s7, %s8
  %s10 = sld [smem:[#allocation0]]
  $region70: #{tpu_custom_call.1} parent=0
    _
  %s12 = ssub.s32 1, %s10
  %s13 = scalar_select 0, %s12, %s10
  $region1: #{tpu_custom_call.1} parent=0
    #allocation2 [shape = 'u8[32768]{0}', space=vmem, size = 0x8000, scoped, tag = 'input window, operand 0, single buffered']
    #allocation3 [shape = 's32[1]{0}', space=sflag, size = 0x4, scoped, tag = 'scoped memory for tpu_custom_call.1']
    #allocation4 [shape = 's32[1]{0}', space=sflag, size = 0x4, scoped, tag = 'scoped memory for tpu_custom_call.1']
    #allocation5 [shape = 'u8[8192]{0}', space=vmem, size = 0x2000, scoped, tag = 'input window, operand 1, single buffered']
    #allocation6 [shape = 's32[1]{0}', space=sflag, size = 0x4, scoped, tag = 'scoped memory for tpu_custom_call.1']
    #allocation7 [shape = 'u8[65536]{0}', space=vmem, size = 0x10000, scoped, tag = 'input window, operand 2, single buffered']
    #allocation8 [shape = 'u8[65536]{0}', space=vmem, size = 0x10000, scoped, tag = 'input window, operand 4, single buffered']
    #allocation9 [shape = 's32[1]{0}', space=sflag, size = 0x4, scoped, tag = 'scoped memory for tpu_custom_call.1']
    #allocation10 [shape = 'u8[65536]{0}', space=vmem, size = 0x10000, scoped, tag = 'input window, operand 5, single buffered']
    #allocation11 [shape = 'u8[32768]{0}', space=vmem, size = 0x8000, scoped, tag = 'output window, operand 0, single buffered']
    #allocation12 [shape = 'u8[8192]{0}', space=vmem, size = 0x2000, scoped, tag = 'output window, operand 1, single buffered']
    #allocation13 [shape = 's32[1]{0}', space=sflag, size = 0x4, scoped, tag = 'scoped memory for tpu_custom_call.1']
    %14 = vsyncpa [#allocation3], 0
    %15 = vsyncpa [#allocation6], 0
    %16 = vsyncpa [#allocation9], 0
    %17 = vsyncpa [#allocation4], 0
    %18 = vsyncpa [#allocation13], 0
    // Predicated region
    $region2: #{tpu_custom_call.1} parent=1 // pred_check
      _
    $region3: #{tpu_custom_call.1} parent=1 // pred_check_branch
      %20 = sbr.rel (0) target = $region5
    $region4: #{tpu_custom_call.1} parent=1 // pred_region
      %s22 = ssub.s32 1024, 1024
      %23 = vsyncadd [#allocation3], %s22
      %s24 = sshll.u32 [#allocation2], 4
      %s25 = int_to_ptr.vmem [resolvable:$true] %s24
      %30 = dma.hbm_to_vmem [thread:$0]  %s0, 1024, %s25, [#allocation3], 128, 128, 8
    $region5: #{tpu_custom_call.1} parent=1 // pred_fallthru
      _
    // Predicated region
    $region6: #{tpu_custom_call.1} parent=1 // pred_check
      _
    $region7: #{tpu_custom_call.1} parent=1 // pred_check_branch
      %32 = sbr.rel (0) target = $region9
    $region8: #{tpu_custom_call.1} parent=1 // pred_region
      %s34 = ssub.s32 256, 256
      %35 = vsyncadd [#allocation6], %s34
      %s36 = sshll.u32 [#allocation5], 4
      %s37 = int_to_ptr.vmem [resolvable:$true] %s36
      %42 = dma.hbm_to_vmem [thread:$0]  %s1, 256, %s37, [#allocation6], 128, 128, 8
    $region9: #{tpu_custom_call.1} parent=1 // pred_fallthru
      _
    // Predicated region
    $region10: #{tpu_custom_call.1} parent=1 // pred_check
      _
    $region11: #{tpu_custom_call.1} parent=1 // pred_check_branch
      %44 = sbr.rel (0) target = $region13
    $region12: #{tpu_custom_call.1} parent=1 // pred_region
      %s46 = ssub.s32 2048, 2048
      %47 = vsyncadd [#allocation6], %s46
      %s48 = sshll.u32 [#allocation7], 4
      %s49 = int_to_ptr.vmem [resolvable:$true] %s48
      %54 = dma.hbm_to_vmem [thread:$0]  %s2, 2048, %s49, [#allocation6], 128, 128, 8
    $region13: #{tpu_custom_call.1} parent=1 // pred_fallthru
      _
    // Predicated region
    $region14: #{tpu_custom_call.1} parent=1 // pred_check
      _
    $region15: #{tpu_custom_call.1} parent=1 // pred_check_branch
      %56 = sbr.rel (0) target = $region17
    $region16: #{tpu_custom_call.1} parent=1 // pred_region
      _
    $region17: #{tpu_custom_call.1} parent=1 // pred_fallthru
      _
    // Predicated region
    $region18: #{tpu_custom_call.1} parent=1 // pred_check
      _
    $region19: #{tpu_custom_call.1} parent=1 // pred_check_branch
      %58 = sbr.rel (0) target = $region21
    $region20: #{tpu_custom_call.1} parent=1 // pred_region
      %s60 = ssub.s32 2048, 2048
      %61 = vsyncadd [#allocation9], %s60
      %s62 = sshll.u32 [#allocation8], 4
      %s63 = int_to_ptr.vmem [resolvable:$true] %s62
      %68 = dma.hbm_to_vmem [thread:$0]  %s4, 2048, %s63, [#allocation9], 128, 128, 8
    $region21: #{tpu_custom_call.1} parent=1 // pred_fallthru
      _
    // Predicated region
    $region22: #{tpu_custom_call.1} parent=1 // pred_check
      _
    $region23: #{tpu_custom_call.1} parent=1 // pred_check_branch
      %70 = sbr.rel (0) target = $region25
    $region24: #{tpu_custom_call.1} parent=1 // pred_region
      %s72 = ssub.s32 2048, 2048
      %73 = vsyncadd [#allocation9], %s72
      %s74 = sshll.u32 [#allocation10], 4
      %s75 = int_to_ptr.vmem [resolvable:$true] %s74
      %80 = dma.hbm_to_vmem [thread:$0]  %s5, 2048, %s75, [#allocation9], 128, 128, 8
    $region25: #{tpu_custom_call.1} parent=1 // pred_fallthru
      _
    // Predicated region
    $region26: #{tpu_custom_call.1} parent=1 // pred_check
      _
    $region27: #{tpu_custom_call.1} parent=1 // pred_check_branch
      %82 = sbr.rel (0) target = $region29
    $region28: #{tpu_custom_call.1} parent=1 // pred_region
      _
    $region29: #{tpu_custom_call.1} parent=1 // pred_fallthru
      _
    // Predicated region
    $region30: #{tpu_custom_call.1} parent=1 // pred_check
      _
    $region31: #{tpu_custom_call.1} parent=1 // pred_check_branch
      %84 = sbr.rel (0) target = $region33
    $region32: #{tpu_custom_call.1} parent=1 // pred_region
      %85 = dma.done [#allocation3], 1024
    $region33: #{tpu_custom_call.1} parent=1 // pred_fallthru
      _
    // Predicated region
    $region34: #{tpu_custom_call.1} parent=1 // pred_check
      _
    $region35: #{tpu_custom_call.1} parent=1 // pred_check_branch
      %87 = sbr.rel (0) target = $region37
    $region36: #{tpu_custom_call.1} parent=1 // pred_region
      %88 = dma.done [#allocation6], 256
    $region37: #{tpu_custom_call.1} parent=1 // pred_fallthru
      _
    // Predicated region
    $region38: #{tpu_custom_call.1} parent=1 // pred_check
      _
    $region39: #{tpu_custom_call.1} parent=1 // pred_check_branch
      %90 = sbr.rel (0) target = $region41
    $region40: #{tpu_custom_call.1} parent=1 // pred_region
      %91 = dma.done [#allocation6], 2048
    $region41: #{tpu_custom_call.1} parent=1 // pred_fallthru
      _
    // Predicated region
    $region42: #{tpu_custom_call.1} parent=1 // pred_check
      _
    $region43: #{tpu_custom_call.1} parent=1 // pred_check_branch
      %93 = sbr.rel (0) target = $region45
    $region44: #{tpu_custom_call.1} parent=1 // pred_region
      %94 = dma.done [#allocation9], 2048
    $region45: #{tpu_custom_call.1} parent=1 // pred_fallthru
      _
    // Predicated region
    $region46: #{tpu_custom_call.1} parent=1 // pred_check
      _
    $region47: #{tpu_custom_call.1} parent=1 // pred_check_branch
      %96 = sbr.rel (0) target = $region49
    $region48: #{tpu_custom_call.1} parent=1 // pred_region
      %97 = dma.done [#allocation9], 2048
    $region49: #{tpu_custom_call.1} parent=1 // pred_fallthru
      _
    %p98 = scmp.eq.s32.totalorder 0, 0
    // Predicated region
    $region50: #{tpu_custom_call.1} parent=1 // pred_check
      %p99 = pneg %p98
    $region51: #{tpu_custom_call.1} parent=1 // pred_check_branch
      %101 = sbr.rel (%p99) target = $region53
    $region52: #{tpu_custom_call.1} parent=1 // pred_region
      %102 = vst [vmem:[#allocation12] sm:$0xff] 0.0
      %103 = vst [vmem:[#allocation12 + $0x8] sm:$0xff] 0.0
    $region53: #{tpu_custom_call.1} parent=1 // pred_fallthru
      _
    %v104 = vld [vmem:[#allocation2] sm:$0xff]
    %v105 = vld [vmem:[#allocation2 + $0x8] sm:$0xff]
    %v106 = vld [vmem:[#allocation2 + $0x10] sm:$0xff]
    %v107 = vld [vmem:[#allocation2 + $0x18] sm:$0xff]
    %v108 = vld [vmem:[#allocation2 + $0x20] sm:$0xff]
    %v109 = vld [vmem:[#allocation2 + $0x28] sm:$0xff]
    %v110 = vld [vmem:[#allocation2 + $0x30] sm:$0xff]
    %v111 = vld [vmem:[#allocation2 + $0x38] sm:$0xff]
    %v112 = vld [vmem:[#allocation5] sm:$0xff]
    %v113 = vld [vmem:[#allocation5 + $0x8] sm:$0xff]
    %v114 = vld [vmem:[%s3] sm:$0x1]
    %v116 = vlaneseq
    %v117 = vshrl.u32 %v116, 7
    %v118 = vsub.s32 0, %v117
    %v119 = vrot.slane %v114, %v118
    %vm121 = vcmask 130048
    %v123 = vsel %vm121, %v104, 0
    %v126 = vsel %vm121, %v105, 0
    %v129 = vsel %vm121, %v106, 0
    %v132 = vsel %vm121, %v107, 0
    %v135 = vsel %vm121, %v108, 0
    %v138 = vsel %vm121, %v109, 0
    %v141 = vsel %vm121, %v110, 0
    %v144 = vsel %vm121, %v111, 0
    %146 = vmatprep.subr.mxu0 0.0
    %147 = vmatpush1.msra.mxu0 %v112
    %148 = vmatprep.subr.mxu0 0.0
    %149 = vmatpush1.msra.mxu0 %v113
    %150 = vmatprep.subr.mxu0 0.0
    %151 = vmatpush1.msra.mxu0 0.0
    %152 = vmatprep.subr.mxu0 0.0
    %153 = vmatpush1.msra.mxu0 0.0
    %154 = vmatprep.subr.mxu0 0.0
    %155 = vmatpush1.msra.mxu0 0.0
    %156 = vmatprep.subr.mxu0 0.0
    %157 = vmatpush1.msra.mxu0 0.0
    %158 = vmatprep.subr.mxu0 0.0
    %159 = vmatpush1.msra.mxu0 0.0
    %160 = vmatprep.subr.mxu0 0.0
    %161 = vmatpush1.msra.mxu0 0.0
    %162 = vmatprep.subr.mxu0 0.0
    %163 = vmatpush1.msra.mxu0 0.0
    %164 = vmatprep.subr.mxu0 0.0
    %165 = vmatpush1.msra.mxu0 0.0
    %166 = vmatprep.subr.mxu0 0.0
    %167 = vmatpush1.msra.mxu0 0.0
    %168 = vmatprep.subr.mxu0 0.0
    %169 = vmatpush1.msra.mxu0 0.0
    %170 = vmatprep.subr.mxu0 0.0
    %171 = vmatpush1.msra.mxu0 0.0
    %172 = vmatprep.subr.mxu0 0.0
    %173 = vmatpush1.msra.mxu0 0.0
    %174 = vmatprep.subr.mxu0 0.0
    %175 = vmatpush1.msra.mxu0 0.0
    %176 = vmatprep.subr.mxu0 0.0
    %177 = vmatpush1.msra.mxu0 0.0
    %178 = vmatprep.subr.mxu0 0.0
    %179 = vmatpush1.msra.mxu0 0.0
    %180 = vmatprep.subr.mxu0 0.0
    %181 = vmatpush1.msra.mxu0 0.0
    %182 = vmatprep.subr.mxu0 0.0
    %183 = vmatpush1.msra.mxu0 0.0
    %184 = vmatprep.subr.mxu0 0.0
    %185 = vmatpush1.msra.mxu0 0.0
    %186 = vmatprep.subr.mxu0 0.0
    %187 = vmatpush1.msra.mxu0 0.0
    %188 = vmatprep.subr.mxu0 0.0
    %189 = vmatpush1.msra.mxu0 0.0
    %190 = vmatprep.subr.mxu0 0.0
    %191 = vmatpush1.msra.mxu0 0.0
    %192 = vmatprep.subr.mxu0 0.0
    %193 = vmatpush1.msra.mxu0 0.0
    %194 = vmatprep.subr.mxu0 0.0
    %195 = vmatpush1.msra.mxu0 0.0
    %196 = vmatprep.subr.mxu0 0.0
    %197 = vmatpush1.msra.mxu0 0.0
    %198 = vmatprep.subr.mxu0 0.0
    %199 = vmatpush1.msra.mxu0 0.0
    %200 = vmatprep.subr.mxu0 0.0
    %201 = vmatpush1.msra.mxu0 0.0
    %202 = vmatprep.subr.mxu0 0.0
    %203 = vmatpush1.msra.mxu0 0.0
    %204 = vmatprep.subr.mxu0 0.0
    %205 = vmatpush1.msra.mxu0 0.0
    %206 = vmatprep.subr.mxu0 0.0
    %207 = vmatpush1.msra.mxu0 0.0
    %208 = vmatprep.subr.mxu0 0.0
    %209 = vmatpush1.msra.mxu0 0.0
    %210 = vmatprep.mubr.f32.mxu0 0.0
    %211 = vmatmul.mubr.f32.gmra.mrb[0].mxu0 %v123
    %v212 = vpop.f32.mrb[0].mxu0
    %v213 = vadd.f32 %v119, %v212
    %v214 = vpop.f32.mrb[0].mxu0
    %215 = vmatprep.mubr.f32.mxu0 0.0
    %216 = vmatmul.mubr.f32.gmra.mrb[0].mxu0 %v126
    %v217 = vpop.f32.mrb[0].mxu0
    %v218 = vadd.f32 %v119, %v217
    %v219 = vpop.f32.mrb[0].mxu0
    %220 = vmatprep.mubr.f32.mxu0 0.0
    %221 = vmatmul.mubr.f32.gmra.mrb[0].mxu0 %v129
    %v222 = vpop.f32.mrb[0].mxu0
    %v223 = vadd.f32 %v119, %v222
    %v224 = vpop.f32.mrb[0].mxu0
    %225 = vmatprep.mubr.f32.mxu0 0.0
    %226 = vmatmul.mubr.f32.gmra.mrb[0].mxu0 %v132
    %v227 = vpop.f32.mrb[0].mxu0
    %v228 = vadd.f32 %v119, %v227
    %v229 = vpop.f32.mrb[0].mxu0
    %230 = vmatprep.mubr.f32.mxu0 0.0
    %231 = vmatmul.mubr.f32.gmra.mrb[0].mxu0 %v135
    %v232 = vpop.f32.mrb[0].mxu0
    %v233 = vadd.f32 %v119, %v232
    %v234 = vpop.f32.mrb[0].mxu0
    %235 = vmatprep.mubr.f32.mxu0 0.0
    %236 = vmatmul.mubr.f32.gmra.mrb[0].mxu0 %v138
    %v237 = vpop.f32.mrb[0].mxu0
    %v238 = vadd.f32 %v119, %v237
    %v239 = vpop.f32.mrb[0].mxu0
    %240 = vmatprep.mubr.f32.mxu0 0.0
    %241 = vmatmul.mubr.f32.gmra.mrb[0].mxu0 %v141
    %v242 = vpop.f32.mrb[0].mxu0
    %v243 = vadd.f32 %v119, %v242
    %v244 = vpop.f32.mrb[0].mxu0
    %245 = vmatprep.mubr.f32.mxu0 0.0
    %246 = vmatmul.mubr.f32.gmra.mrb[0].mxu0 %v144
    %v247 = vpop.f32.mrb[0].mxu0
    %v248 = vadd.f32 %v119, %v247
    %v249 = vpop.f32.mrb[0].mxu0
    %250 = vdwg.mxu0
    %v251 = vld [vmem:[#allocation7] sm:$0xff]
    %v252 = vld [vmem:[#allocation7 + $0x8] sm:$0xff]
    %v253 = vld [vmem:[#allocation7 + $0x10] sm:$0xff]
    %v254 = vld [vmem:[#allocation7 + $0x18] sm:$0xff]
    %v255 = vld [vmem:[#allocation7 + $0x20] sm:$0xff]
    %v256 = vld [vmem:[#allocation7 + $0x28] sm:$0xff]
    %v257 = vld [vmem:[#allocation7 + $0x30] sm:$0xff]
    %v258 = vld [vmem:[#allocation7 + $0x38] sm:$0xff]
    %v259 = vld [vmem:[#allocation7 + $0x40] sm:$0xff]
    %v260 = vld [vmem:[#allocation7 + $0x48] sm:$0xff]
    %v261 = vld [vmem:[#allocation7 + $0x50] sm:$0xff]
    %v262 = vld [vmem:[#allocation7 + $0x58] sm:$0xff]
    %v263 = vld [vmem:[#allocation7 + $0x60] sm:$0xff]
    %v264 = vld [vmem:[#allocation7 + $0x68] sm:$0xff]
    %v265 = vld [vmem:[#allocation7 + $0x70] sm:$0xff]
    %v266 = vld [vmem:[#allocation7 + $0x78] sm:$0xff]
    %v267 = vld [vmem:[#allocation8] sm:$0xff]
    %v268 = vld [vmem:[#allocation8 + $0x8] sm:$0xff]
    %v269 = vld [vmem:[#allocation8 + $0x10] sm:$0xff]
    %v270 = vld [vmem:[#allocation8 + $0x18] sm:$0xff]
    %v271 = vld [vmem:[#allocation8 + $0x20] sm:$0xff]
    %v272 = vld [vmem:[#allocation8 + $0x28] sm:$0xff]
    %v273 = vld [vmem:[#allocation8 + $0x30] sm:$0xff]
    %v274 = vld [vmem:[#allocation8 + $0x38] sm:$0xff]
    %v275 = vld [vmem:[#allocation8 + $0x40] sm:$0xff]
    %v276 = vld [vmem:[#allocation8 + $0x48] sm:$0xff]
    %v277 = vld [vmem:[#allocation8 + $0x50] sm:$0xff]
    %v278 = vld [vmem:[#allocation8 + $0x58] sm:$0xff]
    %v279 = vld [vmem:[#allocation8 + $0x60] sm:$0xff]
    %v280 = vld [vmem:[#allocation8 + $0x68] sm:$0xff]
    %v281 = vld [vmem:[#allocation8 + $0x70] sm:$0xff]
    %v282 = vld [vmem:[#allocation8 + $0x78] sm:$0xff]
    %v283 = vld [vmem:[#allocation10] sm:$0xff]
    %v284 = vld [vmem:[#allocation10 + $0x8] sm:$0xff]
    %v285 = vld [vmem:[#allocation10 + $0x10] sm:$0xff]
    %v286 = vld [vmem:[#allocation10 + $0x18] sm:$0xff]
    %v287 = vld [vmem:[#allocation10 + $0x20] sm:$0xff]
    %v288 = vld [vmem:[#allocation10 + $0x28] sm:$0xff]
    %v289 = vld [vmem:[#allocation10 + $0x30] sm:$0xff]
    %v290 = vld [vmem:[#allocation10 + $0x38] sm:$0xff]
    %v291 = vld [vmem:[#allocation10 + $0x40] sm:$0xff]
    %v292 = vld [vmem:[#allocation10 + $0x48] sm:$0xff]
    %v293 = vld [vmem:[#allocation10 + $0x50] sm:$0xff]
    %v294 = vld [vmem:[#allocation10 + $0x58] sm:$0xff]
    %v295 = vld [vmem:[#allocation10 + $0x60] sm:$0xff]
    %v296 = vld [vmem:[#allocation10 + $0x68] sm:$0xff]
    %v297 = vld [vmem:[#allocation10 + $0x70] sm:$0xff]
    %v298 = vld [vmem:[#allocation10 + $0x78] sm:$0xff]
    %v299 = vld [vmem:[%s6] sm:$0x1]
    %v301 = vlaneseq
    %v302 = vshrl.u32 %v301, 7
    %v303 = vsub.s32 0, %v302
    %v304 = vrot.slane %v299, %v303
    %v306 = vld [vmem:[#allocation12] sm:$0xff]
    %s307 = scalar_lea.vmem [#allocation12], 8
    %v308 = vld [vmem:[%s307] sm:$0xff]
    %309 = vmatprep.subr.mxu0 0.0
    %310 = vmatpush1.msra.mxu0 %v251
    %311 = vmatprep.subr.mxu0 0.0
    %312 = vmatpush1.msra.mxu0 %v252
    %313 = vmatprep.subr.mxu0 0.0
    %314 = vmatpush1.msra.mxu0 %v253
    %315 = vmatprep.subr.mxu0 0.0
    %316 = vmatpush1.msra.mxu0 %v254
    %317 = vmatprep.subr.mxu0 0.0
    %318 = vmatpush1.msra.mxu0 %v255
    %319 = vmatprep.subr.mxu0 0.0
    %320 = vmatpush1.msra.mxu0 %v256
    %321 = vmatprep.subr.mxu0 0.0
    %322 = vmatpush1.msra.mxu0 %v257
    %323 = vmatprep.subr.mxu0 0.0
    %324 = vmatpush1.msra.mxu0 %v258
    %325 = vmatprep.subr.mxu0 0.0
    %326 = vmatpush1.msra.mxu0 %v259
    %327 = vmatprep.subr.mxu0 0.0
    %328 = vmatpush1.msra.mxu0 %v260
    %329 = vmatprep.subr.mxu0 0.0
    %330 = vmatpush1.msra.mxu0 %v261
    %331 = vmatprep.subr.mxu0 0.0
    %332 = vmatpush1.msra.mxu0 %v262
    %333 = vmatprep.subr.mxu0 0.0
    %334 = vmatpush1.msra.mxu0 %v263
    %335 = vmatprep.subr.mxu0 0.0
    %336 = vmatpush1.msra.mxu0 %v264
    %337 = vmatprep.subr.mxu0 0.0
    %338 = vmatpush1.msra.mxu0 %v265
    %339 = vmatprep.subr.mxu0 0.0
    %340 = vmatpush1.msra.mxu0 %v266
    %341 = vmatprep.subr.mxu0 0.0
    %342 = vmatpush1.msra.mxu0 0.0
    %343 = vmatprep.subr.mxu0 0.0
    %344 = vmatpush1.msra.mxu0 0.0
    %345 = vmatprep.subr.mxu0 0.0
    %346 = vmatpush1.msra.mxu0 0.0
    %347 = vmatprep.subr.mxu0 0.0
    %348 = vmatpush1.msra.mxu0 0.0
    %349 = vmatprep.subr.mxu0 0.0
    %350 = vmatpush1.msra.mxu0 0.0
    %351 = vmatprep.subr.mxu0 0.0
    %352 = vmatpush1.msra.mxu0 0.0
    %353 = vmatprep.subr.mxu0 0.0
    %354 = vmatpush1.msra.mxu0 0.0
    %355 = vmatprep.subr.mxu0 0.0
    %356 = vmatpush1.msra.mxu0 0.0
    %357 = vmatprep.subr.mxu0 0.0
    %358 = vmatpush1.msra.mxu0 0.0
    %359 = vmatprep.subr.mxu0 0.0
    %360 = vmatpush1.msra.mxu0 0.0
    %361 = vmatprep.subr.mxu0 0.0
    %362 = vmatpush1.msra.mxu0 0.0
    %363 = vmatprep.subr.mxu0 0.0
    %364 = vmatpush1.msra.mxu0 0.0
    %365 = vmatprep.subr.mxu0 0.0
    %366 = vmatpush1.msra.mxu0 0.0
    %367 = vmatprep.subr.mxu0 0.0
    %368 = vmatpush1.msra.mxu0 0.0
    %369 = vmatprep.subr.mxu0 0.0
    %370 = vmatpush1.msra.mxu0 0.0
    %371 = vmatprep.subr.mxu0 0.0
    %372 = vmatpush1.msra.mxu0 0.0
    %373 = vmatprep.mubr.f32.mxu0 0.0
    %374 = vmatmul.mubr.f32.gmra.mrb[0].mxu0 %v306
    %v375 = vpop.f32.mrb[0].mxu0
    %v376 = vadd.f32 0.0, %v375
    %v377 = vpop.f32.mrb[0].mxu0
    %378 = vdwg.mxu0
    %v379 = vadd.f32 %v213, %v376
    %v380 = vtanh.pop %v379
    %381 = vmatprep.subr.mxu0 0.0
    %382 = vmatpush1.msra.mxu0 %v283
    %383 = vmatprep.subr.mxu0 0.0
    %384 = vmatpush1.msra.mxu0 %v284
    %385 = vmatprep.subr.mxu0 0.0
    %386 = vmatpush1.msra.mxu0 %v285
    %387 = vmatprep.subr.mxu0 0.0
    %388 = vmatpush1.msra.mxu0 %v286
    %389 = vmatprep.subr.mxu0 0.0
    %390 = vmatpush1.msra.mxu0 %v287
    %391 = vmatprep.subr.mxu0 0.0
    %392 = vmatpush1.msra.mxu0 %v288
    %393 = vmatprep.subr.mxu0 0.0
    %394 = vmatpush1.msra.mxu0 %v289
    %395 = vmatprep.subr.mxu0 0.0
    %396 = vmatpush1.msra.mxu0 %v290
    %397 = vmatprep.subr.mxu0 0.0
    %398 = vmatpush1.msra.mxu0 %v291
    %399 = vmatprep.subr.mxu0 0.0
    %400 = vmatpush1.msra.mxu0 %v292
    %401 = vmatprep.subr.mxu0 0.0
    %402 = vmatpush1.msra.mxu0 %v293
    %403 = vmatprep.subr.mxu0 0.0
    %404 = vmatpush1.msra.mxu0 %v294
    %405 = vmatprep.subr.mxu0 0.0
    %406 = vmatpush1.msra.mxu0 %v295
    %407 = vmatprep.subr.mxu0 0.0
    %408 = vmatpush1.msra.mxu0 %v296
    %409 = vmatprep.subr.mxu0 0.0
    %410 = vmatpush1.msra.mxu0 %v297
    %411 = vmatprep.subr.mxu0 0.0
    %412 = vmatpush1.msra.mxu0 %v298
    %413 = vmatprep.subr.mxu0 0.0
    %414 = vmatpush1.msra.mxu0 0.0
    %415 = vmatprep.subr.mxu0 0.0
    %416 = vmatpush1.msra.mxu0 0.0
    %417 = vmatprep.subr.mxu0 0.0
    %418 = vmatpush1.msra.mxu0 0.0
    %419 = vmatprep.subr.mxu0 0.0
    %420 = vmatpush1.msra.mxu0 0.0
    %421 = vmatprep.subr.mxu0 0.0
    %422 = vmatpush1.msra.mxu0 0.0
    %423 = vmatprep.subr.mxu0 0.0
    %424 = vmatpush1.msra.mxu0 0.0
    %425 = vmatprep.subr.mxu0 0.0
    %426 = vmatpush1.msra.mxu0 0.0
    %427 = vmatprep.subr.mxu0 0.0
    %428 = vmatpush1.msra.mxu0 0.0
    %429 = vmatprep.subr.mxu0 0.0
    %430 = vmatpush1.msra.mxu0 0.0
    %431 = vmatprep.subr.mxu0 0.0
    %432 = vmatpush1.msra.mxu0 0.0
    %433 = vmatprep.subr.mxu0 0.0
    %434 = vmatpush1.msra.mxu0 0.0
    %435 = vmatprep.subr.mxu0 0.0
    %436 = vmatpush1.msra.mxu0 0.0
    %437 = vmatprep.subr.mxu0 0.0
    %438 = vmatpush1.msra.mxu0 0.0
    %439 = vmatprep.subr.mxu0 0.0
    %440 = vmatpush1.msra.mxu0 0.0
    %441 = vmatprep.subr.mxu0 0.0
    %442 = vmatpush1.msra.mxu0 0.0
    %443 = vmatprep.subr.mxu0 0.0
    %444 = vmatpush1.msra.mxu0 0.0
    %445 = vmatprep.mubr.f32.mxu0 0.0
    %446 = vmatmul.mubr.f32.gmra.mrb[0].mxu0 %v308
    %v447 = vpop.f32.mrb[0].mxu0
    %v448 = vadd.f32 0.0, %v447
    %v449 = vpop.f32.mrb[0].mxu0
    %450 = vdwg.mxu0
    %451 = vmatprep.subr.mxu0 0.0
    %452 = vmatpush1.msra.mxu0 %v267
    %453 = vmatprep.subr.mxu0 0.0
    %454 = vmatpush1.msra.mxu0 %v268
    %455 = vmatprep.subr.mxu0 0.0
    %456 = vmatpush1.msra.mxu0 %v269
    %457 = vmatprep.subr.mxu0 0.0
    %458 = vmatpush1.msra.mxu0 %v270
    %459 = vmatprep.subr.mxu0 0.0
    %460 = vmatpush1.msra.mxu0 %v271
    %461 = vmatprep.subr.mxu0 0.0
    %462 = vmatpush1.msra.mxu0 %v272
    %463 = vmatprep.subr.mxu0 0.0
    %464 = vmatpush1.msra.mxu0 %v273
    %465 = vmatprep.subr.mxu0 0.0
    %466 = vmatpush1.msra.mxu0 %v274
    %467 = vmatprep.subr.mxu0 0.0
    %468 = vmatpush1.msra.mxu0 %v275
    %469 = vmatprep.subr.mxu0 0.0
    %470 = vmatpush1.msra.mxu0 %v276
    %471 = vmatprep.subr.mxu0 0.0
    %472 = vmatpush1.msra.mxu0 %v277
    %473 = vmatprep.subr.mxu0 0.0
    %474 = vmatpush1.msra.mxu0 %v278
    %475 = vmatprep.subr.mxu0 0.0
    %476 = vmatpush1.msra.mxu0 %v279
    %477 = vmatprep.subr.mxu0 0.0
    %478 = vmatpush1.msra.mxu0 %v280
    %479 = vmatprep.subr.mxu0 0.0
    %480 = vmatpush1.msra.mxu0 %v281
    %481 = vmatprep.subr.mxu0 0.0
    %482 = vmatpush1.msra.mxu0 %v282
    %483 = vmatprep.subr.mxu0 0.0
    %484 = vmatpush1.msra.mxu0 0.0
    %485 = vmatprep.subr.mxu0 0.0
    %486 = vmatpush1.msra.mxu0 0.0
    %487 = vmatprep.subr.mxu0 0.0
    %488 = vmatpush1.msra.mxu0 0.0
    %489 = vmatprep.subr.mxu0 0.0
    %490 = vmatpush1.msra.mxu0 0.0
    %491 = vmatprep.subr.mxu0 0.0
    %492 = vmatpush1.msra.mxu0 0.0
    %493 = vmatprep.subr.mxu0 0.0
    %494 = vmatpush1.msra.mxu0 0.0
    %495 = vmatprep.subr.mxu0 0.0
    %496 = vmatpush1.msra.mxu0 0.0
    %497 = vmatprep.subr.mxu0 0.0
    %498 = vmatpush1.msra.mxu0 0.0
    %499 = vmatprep.subr.mxu0 0.0
    %500 = vmatpush1.msra.mxu0 0.0
    %501 = vmatprep.subr.mxu0 0.0
    %502 = vmatpush1.msra.mxu0 0.0
    %503 = vmatprep.subr.mxu0 0.0
    %504 = vmatpush1.msra.mxu0 0.0
    %505 = vmatprep.subr.mxu0 0.0
    %506 = vmatpush1.msra.mxu0 0.0
    %507 = vmatprep.subr.mxu0 0.0
    %508 = vmatpush1.msra.mxu0 0.0
    %509 = vmatprep.subr.mxu0 0.0
    %510 = vmatpush1.msra.mxu0 0.0
    %511 = vmatprep.subr.mxu0 0.0
    %512 = vmatpush1.msra.mxu0 0.0
    %513 = vmatprep.subr.mxu0 0.0
    %514 = vmatpush1.msra.mxu0 0.0
    %515 = vmatprep.mubr.f32.mxu0 0.0
    %516 = vmatmul.mubr.f32.gmra.mrb[0].mxu0 %v380
    %v517 = vpop.f32.mrb[0].mxu0
    %v518 = vadd.f32 %v448, %v517
    %v519 = vpop.f32.mrb[0].mxu0
    %520 = vdwg.mxu0
    %v521 = vadd.f32 %v518, %v304
    %v522 = vtanh.pop %v521
    %523 = vmatprep.subr.mxu0 0.0
    %524 = vmatpush1.msra.mxu0 %v251
    %525 = vmatprep.subr.mxu0 0.0
    %526 = vmatpush1.msra.mxu0 %v252
    %527 = vmatprep.subr.mxu0 0.0
    %528 = vmatpush1.msra.mxu0 %v253
    %529 = vmatprep.subr.mxu0 0.0
    %530 = vmatpush1.msra.mxu0 %v254
    %531 = vmatprep.subr.mxu0 0.0
    %532 = vmatpush1.msra.mxu0 %v255
    %533 = vmatprep.subr.mxu0 0.0
    %534 = vmatpush1.msra.mxu0 %v256
    %535 = vmatprep.subr.mxu0 0.0
    %536 = vmatpush1.msra.mxu0 %v257
    %537 = vmatprep.subr.mxu0 0.0
    %538 = vmatpush1.msra.mxu0 %v258
    %539 = vmatprep.subr.mxu0 0.0
    %540 = vmatpush1.msra.mxu0 %v259
    %541 = vmatprep.subr.mxu0 0.0
    %542 = vmatpush1.msra.mxu0 %v260
    %543 = vmatprep.subr.mxu0 0.0
    %544 = vmatpush1.msra.mxu0 %v261
    %545 = vmatprep.subr.mxu0 0.0
    %546 = vmatpush1.msra.mxu0 %v262
    %547 = vmatprep.subr.mxu0 0.0
    %548 = vmatpush1.msra.mxu0 %v263
    %549 = vmatprep.subr.mxu0 0.0
    %550 = vmatpush1.msra.mxu0 %v264
    %551 = vmatprep.subr.mxu0 0.0
    %552 = vmatpush1.msra.mxu0 %v265
    %553 = vmatprep.subr.mxu0 0.0
    %554 = vmatpush1.msra.mxu0 %v266
    %555 = vmatprep.subr.mxu0 0.0
    %556 = vmatpush1.msra.mxu0 0.0
    %557 = vmatprep.subr.mxu0 0.0
    %558 = vmatpush1.msra.mxu0 0.0
    %559 = vmatprep.subr.mxu0 0.0
    %560 = vmatpush1.msra.mxu0 0.0
    %561 = vmatprep.subr.mxu0 0.0
    %562 = vmatpush1.msra.mxu0 0.0
    %563 = vmatprep.subr.mxu0 0.0
    %564 = vmatpush1.msra.mxu0 0.0
    %565 = vmatprep.subr.mxu0 0.0
    %566 = vmatpush1.msra.mxu0 0.0
    %567 = vmatprep.subr.mxu0 0.0
    %568 = vmatpush1.msra.mxu0 0.0
    %569 = vmatprep.subr.mxu0 0.0
    %570 = vmatpush1.msra.mxu0 0.0
    %571 = vmatprep.subr.mxu0 0.0
    %572 = vmatpush1.msra.mxu0 0.0
    %573 = vmatprep.subr.mxu0 0.0
    %574 = vmatpush1.msra.mxu0 0.0
    %575 = vmatprep.subr.mxu0 0.0
    %576 = vmatpush1.msra.mxu0 0.0
    %577 = vmatprep.subr.mxu0 0.0
    %578 = vmatpush1.msra.mxu0 0.0
    %579 = vmatprep.subr.mxu0 0.0
    %580 = vmatpush1.msra.mxu0 0.0
    %581 = vmatprep.subr.mxu0 0.0
    %582 = vmatpush1.msra.mxu0 0.0
    %583 = vmatprep.subr.mxu0 0.0
    %584 = vmatpush1.msra.mxu0 0.0
    %585 = vmatprep.subr.mxu0 0.0
    %586 = vmatpush1.msra.mxu0 0.0
    %587 = vmatprep.mubr.f32.mxu0 0.0
    %588 = vmatmul.mubr.f32.gmra.mrb[0].mxu0 %v380
    %v589 = vpop.f32.mrb[0].mxu0
    %v590 = vadd.f32 0.0, %v589
    %v591 = vpop.f32.mrb[0].mxu0
    %592 = vdwg.mxu0
    %v593 = vadd.f32 %v218, %v590
    %v594 = vtanh.pop %v593
    %595 = vmatprep.subr.mxu0 0.0
    %596 = vmatpush1.msra.mxu0 %v283
    %597 = vmatprep.subr.mxu0 0.0
    %598 = vmatpush1.msra.mxu0 %v284
    %599 = vmatprep.subr.mxu0 0.0
    %600 = vmatpush1.msra.mxu0 %v285
    %601 = vmatprep.subr.mxu0 0.0
    %602 = vmatpush1.msra.mxu0 %v286
    %603 = vmatprep.subr.mxu0 0.0
    %604 = vmatpush1.msra.mxu0 %v287
    %605 = vmatprep.subr.mxu0 0.0
    %606 = vmatpush1.msra.mxu0 %v288
    %607 = vmatprep.subr.mxu0 0.0
    %608 = vmatpush1.msra.mxu0 %v289
    %609 = vmatprep.subr.mxu0 0.0
    %610 = vmatpush1.msra.mxu0 %v290
    %611 = vmatprep.subr.mxu0 0.0
    %612 = vmatpush1.msra.mxu0 %v291
    %613 = vmatprep.subr.mxu0 0.0
    %614 = vmatpush1.msra.mxu0 %v292
    %615 = vmatprep.subr.mxu0 0.0
    %616 = vmatpush1.msra.mxu0 %v293
    %617 = vmatprep.subr.mxu0 0.0
    %618 = vmatpush1.msra.mxu0 %v294
    %619 = vmatprep.subr.mxu0 0.0
    %620 = vmatpush1.msra.mxu0 %v295
    %621 = vmatprep.subr.mxu0 0.0
    %622 = vmatpush1.msra.mxu0 %v296
    %623 = vmatprep.subr.mxu0 0.0
    %624 = vmatpush1.msra.mxu0 %v297
    %625 = vmatprep.subr.mxu0 0.0
    %626 = vmatpush1.msra.mxu0 %v298
    %627 = vmatprep.subr.mxu0 0.0
    %628 = vmatpush1.msra.mxu0 0.0
    %629 = vmatprep.subr.mxu0 0.0
    %630 = vmatpush1.msra.mxu0 0.0
    %631 = vmatprep.subr.mxu0 0.0
    %632 = vmatpush1.msra.mxu0 0.0
    %633 = vmatprep.subr.mxu0 0.0
    %634 = vmatpush1.msra.mxu0 0.0
    %635 = vmatprep.subr.mxu0 0.0
    %636 = vmatpush1.msra.mxu0 0.0
    %637 = vmatprep.subr.mxu0 0.0
    %638 = vmatpush1.msra.mxu0 0.0
    %639 = vmatprep.subr.mxu0 0.0
    %640 = vmatpush1.msra.mxu0 0.0
    %641 = vmatprep.subr.mxu0 0.0
    %642 = vmatpush1.msra.mxu0 0.0
    %643 = vmatprep.subr.mxu0 0.0
    %644 = vmatpush1.msra.mxu0 0.0
    %645 = vmatprep.subr.mxu0 0.0
    %646 = vmatpush1.msra.mxu0 0.0
    %647 = vmatprep.subr.mxu0 0.0
    %648 = vmatpush1.msra.mxu0 0.0
    %649 = vmatprep.subr.mxu0 0.0
    %650 = vmatpush1.msra.mxu0 0.0
    %651 = vmatprep.subr.mxu0 0.0
    %652 = vmatpush1.msra.mxu0 0.0
    %653 = vmatprep.subr.mxu0 0.0
    %654 = vmatpush1.msra.mxu0 0.0
    %655 = vmatprep.subr.mxu0 0.0
    %656 = vmatpush1.msra.mxu0 0.0
    %657 = vmatprep.subr.mxu0 0.0
    %658 = vmatpush1.msra.mxu0 0.0
    %659 = vmatprep.mubr.f32.mxu0 0.0
    %660 = vmatmul.mubr.f32.gmra.mrb[0].mxu0 %v522
    %v661 = vpop.f32.mrb[0].mxu0
    %v662 = vadd.f32 0.0, %v661
    %v663 = vpop.f32.mrb[0].mxu0
    %664 = vdwg.mxu0
    %665 = vmatprep.subr.mxu0 0.0
    %666 = vmatpush1.msra.mxu0 %v267
    %667 = vmatprep.subr.mxu0 0.0
    %668 = vmatpush1.msra.mxu0 %v268
    %669 = vmatprep.subr.mxu0 0.0
    %670 = vmatpush1.msra.mxu0 %v269
    %671 = vmatprep.subr.mxu0 0.0
    %672 = vmatpush1.msra.mxu0 %v270
    %673 = vmatprep.subr.mxu0 0.0
    %674 = vmatpush1.msra.mxu0 %v271
    %675 = vmatprep.subr.mxu0 0.0
    %676 = vmatpush1.msra.mxu0 %v272
    %677 = vmatprep.subr.mxu0 0.0
    %678 = vmatpush1.msra.mxu0 %v273
    %679 = vmatprep.subr.mxu0 0.0
    %680 = vmatpush1.msra.mxu0 %v274
    %681 = vmatprep.subr.mxu0 0.0
    %682 = vmatpush1.msra.mxu0 %v275
    %683 = vmatprep.subr.mxu0 0.0
    %684 = vmatpush1.msra.mxu0 %v276
    %685 = vmatprep.subr.mxu0 0.0
    %686 = vmatpush1.msra.mxu0 %v277
    %687 = vmatprep.subr.mxu0 0.0
    %688 = vmatpush1.msra.mxu0 %v278
    %689 = vmatprep.subr.mxu0 0.0
    %690 = vmatpush1.msra.mxu0 %v279
    %691 = vmatprep.subr.mxu0 0.0
    %692 = vmatpush1.msra.mxu0 %v280
    %693 = vmatprep.subr.mxu0 0.0
    %694 = vmatpush1.msra.mxu0 %v281
    %695 = vmatprep.subr.mxu0 0.0
    %696 = vmatpush1.msra.mxu0 %v282
    %697 = vmatprep.subr.mxu0 0.0
    %698 = vmatpush1.msra.mxu0 0.0
    %699 = vmatprep.subr.mxu0 0.0
    %700 = vmatpush1.msra.mxu0 0.0
    %701 = vmatprep.subr.mxu0 0.0
    %702 = vmatpush1.msra.mxu0 0.0
    %703 = vmatprep.subr.mxu0 0.0
    %704 = vmatpush1.msra.mxu0 0.0
    %705 = vmatprep.subr.mxu0 0.0
    %706 = vmatpush1.msra.mxu0 0.0
    %707 = vmatprep.subr.mxu0 0.0
    %708 = vmatpush1.msra.mxu0 0.0
    %709 = vmatprep.subr.mxu0 0.0
    %710 = vmatpush1.msra.mxu0 0.0
    %711 = vmatprep.subr.mxu0 0.0
    %712 = vmatpush1.msra.mxu0 0.0
    %713 = vmatprep.subr.mxu0 0.0
    %714 = vmatpush1.msra.mxu0 0.0
    %715 = vmatprep.subr.mxu0 0.0
    %716 = vmatpush1.msra.mxu0 0.0
    %717 = vmatprep.subr.mxu0 0.0
    %718 = vmatpush1.msra.mxu0 0.0
    %719 = vmatprep.subr.mxu0 0.0
    %720 = vmatpush1.msra.mxu0 0.0
    %721 = vmatprep.subr.mxu0 0.0
    %722 = vmatpush1.msra.mxu0 0.0
    %723 = vmatprep.subr.mxu0 0.0
    %724 = vmatpush1.msra.mxu0 0.0
    %725 = vmatprep.subr.mxu0 0.0
    %726 = vmatpush1.msra.mxu0 0.0
    %727 = vmatprep.subr.mxu0 0.0
    %728 = vmatpush1.msra.mxu0 0.0
    %729 = vmatprep.mubr.f32.mxu0 0.0
    %730 = vmatmul.mubr.f32.gmra.mrb[0].mxu0 %v594
    %v731 = vpop.f32.mrb[0].mxu0
    %v732 = vadd.f32 %v662, %v731
    %v733 = vpop.f32.mrb[0].mxu0
    %734 = vdwg.mxu0
    %v735 = vadd.f32 %v732, %v304
    %v736 = vtanh.pop %v735
    %737 = vmatprep.subr.mxu0 0.0
    %738 = vmatpush1.msra.mxu0 %v251
    %739 = vmatprep.subr.mxu0 0.0
    %740 = vmatpush1.msra.mxu0 %v252
    %741 = vmatprep.subr.mxu0 0.0
    %742 = vmatpush1.msra.mxu0 %v253
    %743 = vmatprep.subr.mxu0 0.0
    %744 = vmatpush1.msra.mxu0 %v254
    %745 = vmatprep.subr.mxu0 0.0
    %746 = vmatpush1.msra.mxu0 %v255
    %747 = vmatprep.subr.mxu0 0.0
    %748 = vmatpush1.msra.mxu0 %v256
    %749 = vmatprep.subr.mxu0 0.0
    %750 = vmatpush1.msra.mxu0 %v257
    %751 = vmatprep.subr.mxu0 0.0
    %752 = vmatpush1.msra.mxu0 %v258
    %753 = vmatprep.subr.mxu0 0.0
    %754 = vmatpush1.msra.mxu0 %v259
    %755 = vmatprep.subr.mxu0 0.0
    %756 = vmatpush1.msra.mxu0 %v260
    %757 = vmatprep.subr.mxu0 0.0
    %758 = vmatpush1.msra.mxu0 %v261
    %759 = vmatprep.subr.mxu0 0.0
    %760 = vmatpush1.msra.mxu0 %v262
    %761 = vmatprep.subr.mxu0 0.0
    %762 = vmatpush1.msra.mxu0 %v263
    %763 = vmatprep.subr.mxu0 0.0
    %764 = vmatpush1.msra.mxu0 %v264
    %765 = vmatprep.subr.mxu0 0.0
    %766 = vmatpush1.msra.mxu0 %v265
    %767 = vmatprep.subr.mxu0 0.0
    %768 = vmatpush1.msra.mxu0 %v266
    %769 = vmatprep.subr.mxu0 0.0
    %770 = vmatpush1.msra.mxu0 0.0
    %771 = vmatprep.subr.mxu0 0.0
    %772 = vmatpush1.msra.mxu0 0.0
    %773 = vmatprep.subr.mxu0 0.0
    %774 = vmatpush1.msra.mxu0 0.0
    %775 = vmatprep.subr.mxu0 0.0
    %776 = vmatpush1.msra.mxu0 0.0
    %777 = vmatprep.subr.mxu0 0.0
    %778 = vmatpush1.msra.mxu0 0.0
    %779 = vmatprep.subr.mxu0 0.0
    %780 = vmatpush1.msra.mxu0 0.0
    %781 = vmatprep.subr.mxu0 0.0
    %782 = vmatpush1.msra.mxu0 0.0
    %783 = vmatprep.subr.mxu0 0.0
    %784 = vmatpush1.msra.mxu0 0.0
    %785 = vmatprep.subr.mxu0 0.0
    %786 = vmatpush1.msra.mxu0 0.0
    %787 = vmatprep.subr.mxu0 0.0
    %788 = vmatpush1.msra.mxu0 0.0
    %789 = vmatprep.subr.mxu0 0.0
    %790 = vmatpush1.msra.mxu0 0.0
    %791 = vmatprep.subr.mxu0 0.0
    %792 = vmatpush1.msra.mxu0 0.0
    %793 = vmatprep.subr.mxu0 0.0
    %794 = vmatpush1.msra.mxu0 0.0
    %795 = vmatprep.subr.mxu0 0.0
    %796 = vmatpush1.msra.mxu0 0.0
    %797 = vmatprep.subr.mxu0 0.0
    %798 = vmatpush1.msra.mxu0 0.0
    %799 = vmatprep.subr.mxu0 0.0
    %800 = vmatpush1.msra.mxu0 0.0
    %801 = vmatprep.mubr.f32.mxu0 0.0
    %802 = vmatmul.mubr.f32.gmra.mrb[0].mxu0 %v594
    %v803 = vpop.f32.mrb[0].mxu0
    %v804 = vadd.f32 0.0, %v803
    %v805 = vpop.f32.mrb[0].mxu0
    %806 = vdwg.mxu0
    %v807 = vadd.f32 %v223, %v804
    %v808 = vtanh.pop %v807
    %809 = vmatprep.subr.mxu0 0.0
    %810 = vmatpush1.msra.mxu0 %v283
    %811 = vmatprep.subr.mxu0 0.0
    %812 = vmatpush1.msra.mxu0 %v284
    %813 = vmatprep.subr.mxu0 0.0
    %814 = vmatpush1.msra.mxu0 %v285
    %815 = vmatprep.subr.mxu0 0.0
    %816 = vmatpush1.msra.mxu0 %v286
    %817 = vmatprep.subr.mxu0 0.0
    %818 = vmatpush1.msra.mxu0 %v287
    %819 = vmatprep.subr.mxu0 0.0
    %820 = vmatpush1.msra.mxu0 %v288
    %821 = vmatprep.subr.mxu0 0.0
    %822 = vmatpush1.msra.mxu0 %v289
    %823 = vmatprep.subr.mxu0 0.0
    %824 = vmatpush1.msra.mxu0 %v290
    %825 = vmatprep.subr.mxu0 0.0
    %826 = vmatpush1.msra.mxu0 %v291
    %827 = vmatprep.subr.mxu0 0.0
    %828 = vmatpush1.msra.mxu0 %v292
    %829 = vmatprep.subr.mxu0 0.0
    %830 = vmatpush1.msra.mxu0 %v293
    %831 = vmatprep.subr.mxu0 0.0
    %832 = vmatpush1.msra.mxu0 %v294
    %833 = vmatprep.subr.mxu0 0.0
    %834 = vmatpush1.msra.mxu0 %v295
    %835 = vmatprep.subr.mxu0 0.0
    %836 = vmatpush1.msra.mxu0 %v296
    %837 = vmatprep.subr.mxu0 0.0
    %838 = vmatpush1.msra.mxu0 %v297
    %839 = vmatprep.subr.mxu0 0.0
    %840 = vmatpush1.msra.mxu0 %v298
    %841 = vmatprep.subr.mxu0 0.0
    %842 = vmatpush1.msra.mxu0 0.0
    %843 = vmatprep.subr.mxu0 0.0
    %844 = vmatpush1.msra.mxu0 0.0
    %845 = vmatprep.subr.mxu0 0.0
    %846 = vmatpush1.msra.mxu0 0.0
    %847 = vmatprep.subr.mxu0 0.0
    %848 = vmatpush1.msra.mxu0 0.0
    %849 = vmatprep.subr.mxu0 0.0
    %850 = vmatpush1.msra.mxu0 0.0
    %851 = vmatprep.subr.mxu0 0.0
    %852 = vmatpush1.msra.mxu0 0.0
    %853 = vmatprep.subr.mxu0 0.0
    %854 = vmatpush1.msra.mxu0 0.0
    %855 = vmatprep.subr.mxu0 0.0
    %856 = vmatpush1.msra.mxu0 0.0
    %857 = vmatprep.subr.mxu0 0.0
    %858 = vmatpush1.msra.mxu0 0.0
    %859 = vmatprep.subr.mxu0 0.0
    %860 = vmatpush1.msra.mxu0 0.0
    %861 = vmatprep.subr.mxu0 0.0
    %862 = vmatpush1.msra.mxu0 0.0
    %863 = vmatprep.subr.mxu0 0.0
    %864 = vmatpush1.msra.mxu0 0.0
    %865 = vmatprep.subr.mxu0 0.0
    %866 = vmatpush1.msra.mxu0 0.0
    %867 = vmatprep.subr.mxu0 0.0
    %868 = vmatpush1.msra.mxu0 0.0
    %869 = vmatprep.subr.mxu0 0.0
    %870 = vmatpush1.msra.mxu0 0.0
    %871 = vmatprep.subr.mxu0 0.0
    %872 = vmatpush1.msra.mxu0 0.0
    %873 = vmatprep.mubr.f32.mxu0 0.0
    %874 = vmatmul.mubr.f32.gmra.mrb[0].mxu0 %v736
    %v875 = vpop.f32.mrb[0].mxu0
    %v876 = vadd.f32 0.0, %v875
    %v877 = vpop.f32.mrb[0].mxu0
    %878 = vdwg.mxu0
    %879 = vmatprep.subr.mxu0 0.0
    %880 = vmatpush1.msra.mxu0 %v267
    %881 = vmatprep.subr.mxu0 0.0
    %882 = vmatpush1.msra.mxu0 %v268
    %883 = vmatprep.subr.mxu0 0.0
    %884 = vmatpush1.msra.mxu0 %v269
    %885 = vmatprep.subr.mxu0 0.0
    %886 = vmatpush1.msra.mxu0 %v270
    %887 = vmatprep.subr.mxu0 0.0
    %888 = vmatpush1.msra.mxu0 %v271
    %889 = vmatprep.subr.mxu0 0.0
    %890 = vmatpush1.msra.mxu0 %v272
    %891 = vmatprep.subr.mxu0 0.0
    %892 = vmatpush1.msra.mxu0 %v273
    %893 = vmatprep.subr.mxu0 0.0
    %894 = vmatpush1.msra.mxu0 %v274
    %895 = vmatprep.subr.mxu0 0.0
    %896 = vmatpush1.msra.mxu0 %v275
    %897 = vmatprep.subr.mxu0 0.0
    %898 = vmatpush1.msra.mxu0 %v276
    %899 = vmatprep.subr.mxu0 0.0
    %900 = vmatpush1.msra.mxu0 %v277
    %901 = vmatprep.subr.mxu0 0.0
    %902 = vmatpush1.msra.mxu0 %v278
    %903 = vmatprep.subr.mxu0 0.0
    %904 = vmatpush1.msra.mxu0 %v279
    %905 = vmatprep.subr.mxu0 0.0
    %906 = vmatpush1.msra.mxu0 %v280
    %907 = vmatprep.subr.mxu0 0.0
    %908 = vmatpush1.msra.mxu0 %v281
    %909 = vmatprep.subr.mxu0 0.0
    %910 = vmatpush1.msra.mxu0 %v282
    %911 = vmatprep.subr.mxu0 0.0
    %912 = vmatpush1.msra.mxu0 0.0
    %913 = vmatprep.subr.mxu0 0.0
    %914 = vmatpush1.msra.mxu0 0.0
    %915 = vmatprep.subr.mxu0 0.0
    %916 = vmatpush1.msra.mxu0 0.0
    %917 = vmatprep.subr.mxu0 0.0
    %918 = vmatpush1.msra.mxu0 0.0
    %919 = vmatprep.subr.mxu0 0.0
    %920 = vmatpush1.msra.mxu0 0.0
    %921 = vmatprep.subr.mxu0 0.0
    %922 = vmatpush1.msra.mxu0 0.0
    %923 = vmatprep.subr.mxu0 0.0
    %924 = vmatpush1.msra.mxu0 0.0
    %925 = vmatprep.subr.mxu0 0.0
    %926 = vmatpush1.msra.mxu0 0.0
    %927 = vmatprep.subr.mxu0 0.0
    %928 = vmatpush1.msra.mxu0 0.0
    %929 = vmatprep.subr.mxu0 0.0
    %930 = vmatpush1.msra.mxu0 0.0
    %931 = vmatprep.subr.mxu0 0.0
    %932 = vmatpush1.msra.mxu0 0.0
    %933 = vmatprep.subr.mxu0 0.0
    %934 = vmatpush1.msra.mxu0 0.0
    %935 = vmatprep.subr.mxu0 0.0
    %936 = vmatpush1.msra.mxu0 0.0
    %937 = vmatprep.subr.mxu0 0.0
    %938 = vmatpush1.msra.mxu0 0.0
    %939 = vmatprep.subr.mxu0 0.0
    %940 = vmatpush1.msra.mxu0 0.0
    %941 = vmatprep.subr.mxu0 0.0
    %942 = vmatpush1.msra.mxu0 0.0
    %943 = vmatprep.mubr.f32.mxu0 0.0
    %944 = vmatmul.mubr.f32.gmra.mrb[0].mxu0 %v808
    %v945 = vpop.f32.mrb[0].mxu0
    %v946 = vadd.f32 %v876, %v945
    %v947 = vpop.f32.mrb[0].mxu0
    %948 = vdwg.mxu0
    %v949 = vadd.f32 %v946, %v304
    %v950 = vtanh.pop %v949
    %951 = vmatprep.subr.mxu0 0.0
    %952 = vmatpush1.msra.mxu0 %v251
    %953 = vmatprep.subr.mxu0 0.0
    %954 = vmatpush1.msra.mxu0 %v252
    %955 = vmatprep.subr.mxu0 0.0
    %956 = vmatpush1.msra.mxu0 %v253
    %957 = vmatprep.subr.mxu0 0.0
    %958 = vmatpush1.msra.mxu0 %v254
    %959 = vmatprep.subr.mxu0 0.0
    %960 = vmatpush1.msra.mxu0 %v255
    %961 = vmatprep.subr.mxu0 0.0
    %962 = vmatpush1.msra.mxu0 %v256
    %963 = vmatprep.subr.mxu0 0.0
    %964 = vmatpush1.msra.mxu0 %v257
    %965 = vmatprep.subr.mxu0 0.0
    %966 = vmatpush1.msra.mxu0 %v258
    %967 = vmatprep.subr.mxu0 0.0
    %968 = vmatpush1.msra.mxu0 %v259
    %969 = vmatprep.subr.mxu0 0.0
    %970 = vmatpush1.msra.mxu0 %v260
    %971 = vmatprep.subr.mxu0 0.0
    %972 = vmatpush1.msra.mxu0 %v261
    %973 = vmatprep.subr.mxu0 0.0
    %974 = vmatpush1.msra.mxu0 %v262
    %975 = vmatprep.subr.mxu0 0.0
    %976 = vmatpush1.msra.mxu0 %v263
    %977 = vmatprep.subr.mxu0 0.0
    %978 = vmatpush1.msra.mxu0 %v264
    %979 = vmatprep.subr.mxu0 0.0
    %980 = vmatpush1.msra.mxu0 %v265
    %981 = vmatprep.subr.mxu0 0.0
    %982 = vmatpush1.msra.mxu0 %v266
    %983 = vmatprep.subr.mxu0 0.0
    %984 = vmatpush1.msra.mxu0 0.0
    %985 = vmatprep.subr.mxu0 0.0
    %986 = vmatpush1.msra.mxu0 0.0
    %987 = vmatprep.subr.mxu0 0.0
    %988 = vmatpush1.msra.mxu0 0.0
    %989 = vmatprep.subr.mxu0 0.0
    %990 = vmatpush1.msra.mxu0 0.0
    %991 = vmatprep.subr.mxu0 0.0
    %992 = vmatpush1.msra.mxu0 0.0
    %993 = vmatprep.subr.mxu0 0.0
    %994 = vmatpush1.msra.mxu0 0.0
    %995 = vmatprep.subr.mxu0 0.0
    %996 = vmatpush1.msra.mxu0 0.0
    %997 = vmatprep.subr.mxu0 0.0
    %998 = vmatpush1.msra.mxu0 0.0
    %999 = vmatprep.subr.mxu0 0.0
    %1000 = vmatpush1.msra.mxu0 0.0
    %1001 = vmatprep.subr.mxu0 0.0
    %1002 = vmatpush1.msra.mxu0 0.0
    %1003 = vmatprep.subr.mxu0 0.0
    %1004 = vmatpush1.msra.mxu0 0.0
    %1005 = vmatprep.subr.mxu0 0.0
    %1006 = vmatpush1.msra.mxu0 0.0
    %1007 = vmatprep.subr.mxu0 0.0
    %1008 = vmatpush1.msra.mxu0 0.0
    %1009 = vmatprep.subr.mxu0 0.0
    %1010 = vmatpush1.msra.mxu0 0.0
    %1011 = vmatprep.subr.mxu0 0.0
    %1012 = vmatpush1.msra.mxu0 0.0
    %1013 = vmatprep.subr.mxu0 0.0
    %1014 = vmatpush1.msra.mxu0 0.0
    %1015 = vmatprep.mubr.f32.mxu0 0.0
    %1016 = vmatmul.mubr.f32.gmra.mrb[0].mxu0 %v808
    %v1017 = vpop.f32.mrb[0].mxu0
    %v1018 = vadd.f32 0.0, %v1017
    %v1019 = vpop.f32.mrb[0].mxu0
    %1020 = vdwg.mxu0
    %v1021 = vadd.f32 %v228, %v1018
    %v1022 = vtanh.pop %v1021
    %1023 = vmatprep.subr.mxu0 0.0
    %1024 = vmatpush1.msra.mxu0 %v283
    %1025 = vmatprep.subr.mxu0 0.0
    %1026 = vmatpush1.msra.mxu0 %v284
    %1027 = vmatprep.subr.mxu0 0.0
    %1028 = vmatpush1.msra.mxu0 %v285
    %1029 = vmatprep.subr.mxu0 0.0
    %1030 = vmatpush1.msra.mxu0 %v286
    %1031 = vmatprep.subr.mxu0 0.0
    %1032 = vmatpush1.msra.mxu0 %v287
    %1033 = vmatprep.subr.mxu0 0.0
    %1034 = vmatpush1.msra.mxu0 %v288
    %1035 = vmatprep.subr.mxu0 0.0
    %1036 = vmatpush1.msra.mxu0 %v289
    %1037 = vmatprep.subr.mxu0 0.0
    %1038 = vmatpush1.msra.mxu0 %v290
    %1039 = vmatprep.subr.mxu0 0.0
    %1040 = vmatpush1.msra.mxu0 %v291
    %1041 = vmatprep.subr.mxu0 0.0
    %1042 = vmatpush1.msra.mxu0 %v292
    %1043 = vmatprep.subr.mxu0 0.0
    %1044 = vmatpush1.msra.mxu0 %v293
    %1045 = vmatprep.subr.mxu0 0.0
    %1046 = vmatpush1.msra.mxu0 %v294
    %1047 = vmatprep.subr.mxu0 0.0
    %1048 = vmatpush1.msra.mxu0 %v295
    %1049 = vmatprep.subr.mxu0 0.0
    %1050 = vmatpush1.msra.mxu0 %v296
    %1051 = vmatprep.subr.mxu0 0.0
    %1052 = vmatpush1.msra.mxu0 %v297
    %1053 = vmatprep.subr.mxu0 0.0
    %1054 = vmatpush1.msra.mxu0 %v298
    %1055 = vmatprep.subr.mxu0 0.0
    %1056 = vmatpush1.msra.mxu0 0.0
    %1057 = vmatprep.subr.mxu0 0.0
    %1058 = vmatpush1.msra.mxu0 0.0
    %1059 = vmatprep.subr.mxu0 0.0
    %1060 = vmatpush1.msra.mxu0 0.0
    %1061 = vmatprep.subr.mxu0 0.0
    %1062 = vmatpush1.msra.mxu0 0.0
    %1063 = vmatprep.subr.mxu0 0.0
    %1064 = vmatpush1.msra.mxu0 0.0
    %1065 = vmatprep.subr.mxu0 0.0
    %1066 = vmatpush1.msra.mxu0 0.0
    %1067 = vmatprep.subr.mxu0 0.0
    %1068 = vmatpush1.msra.mxu0 0.0
    %1069 = vmatprep.subr.mxu0 0.0
    %1070 = vmatpush1.msra.mxu0 0.0
    %1071 = vmatprep.subr.mxu0 0.0
    %1072 = vmatpush1.msra.mxu0 0.0
    %1073 = vmatprep.subr.mxu0 0.0
    %1074 = vmatpush1.msra.mxu0 0.0
    %1075 = vmatprep.subr.mxu0 0.0
    %1076 = vmatpush1.msra.mxu0 0.0
    %1077 = vmatprep.subr.mxu0 0.0
    %1078 = vmatpush1.msra.mxu0 0.0
    %1079 = vmatprep.subr.mxu0 0.0
    %1080 = vmatpush1.msra.mxu0 0.0
    %1081 = vmatprep.subr.mxu0 0.0
    %1082 = vmatpush1.msra.mxu0 0.0
    %1083 = vmatprep.subr.mxu0 0.0
    %1084 = vmatpush1.msra.mxu0 0.0
    %1085 = vmatprep.subr.mxu0 0.0
    %1086 = vmatpush1.msra.mxu0 0.0
    %1087 = vmatprep.mubr.f32.mxu0 0.0
    %1088 = vmatmul.mubr.f32.gmra.mrb[0].mxu0 %v950
    %v1089 = vpop.f32.mrb[0].mxu0
    %v1090 = vadd.f32 0.0, %v1089
    %v1091 = vpop.f32.mrb[0].mxu0
    %1092 = vdwg.mxu0
    %1093 = vmatprep.subr.mxu0 0.0
    %1094 = vmatpush1.msra.mxu0 %v267
    %1095 = vmatprep.subr.mxu0 0.0
    %1096 = vmatpush1.msra.mxu0 %v268
    %1097 = vmatprep.subr.mxu0 0.0
    %1098 = vmatpush1.msra.mxu0 %v269
    %1099 = vmatprep.subr.mxu0 0.0
    %1100 = vmatpush1.msra.mxu0 %v270
    %1101 = vmatprep.subr.mxu0 0.0
    %1102 = vmatpush1.msra.mxu0 %v271
    %1103 = vmatprep.subr.mxu0 0.0
    %1104 = vmatpush1.msra.mxu0 %v272
    %1105 = vmatprep.subr.mxu0 0.0
    %1106 = vmatpush1.msra.mxu0 %v273
    %1107 = vmatprep.subr.mxu0 0.0
    %1108 = vmatpush1.msra.mxu0 %v274
    %1109 = vmatprep.subr.mxu0 0.0
    %1110 = vmatpush1.msra.mxu0 %v275
    %1111 = vmatprep.subr.mxu0 0.0
    %1112 = vmatpush1.msra.mxu0 %v276
    %1113 = vmatprep.subr.mxu0 0.0
    %1114 = vmatpush1.msra.mxu0 %v277
    %1115 = vmatprep.subr.mxu0 0.0
    %1116 = vmatpush1.msra.mxu0 %v278
    %1117 = vmatprep.subr.mxu0 0.0
    %1118 = vmatpush1.msra.mxu0 %v279
    %1119 = vmatprep.subr.mxu0 0.0
    %1120 = vmatpush1.msra.mxu0 %v280
    %1121 = vmatprep.subr.mxu0 0.0
    %1122 = vmatpush1.msra.mxu0 %v281
    %1123 = vmatprep.subr.mxu0 0.0
    %1124 = vmatpush1.msra.mxu0 %v282
    %1125 = vmatprep.subr.mxu0 0.0
    %1126 = vmatpush1.msra.mxu0 0.0
    %1127 = vmatprep.subr.mxu0 0.0
    %1128 = vmatpush1.msra.mxu0 0.0
    %1129 = vmatprep.subr.mxu0 0.0
    %1130 = vmatpush1.msra.mxu0 0.0
    %1131 = vmatprep.subr.mxu0 0.0
    %1132 = vmatpush1.msra.mxu0 0.0
    %1133 = vmatprep.subr.mxu0 0.0
    %1134 = vmatpush1.msra.mxu0 0.0
    %1135 = vmatprep.subr.mxu0 0.0
    %1136 = vmatpush1.msra.mxu0 0.0
    %1137 = vmatprep.subr.mxu0 0.0
    %1138 = vmatpush1.msra.mxu0 0.0
    %1139 = vmatprep.subr.mxu0 0.0
    %1140 = vmatpush1.msra.mxu0 0.0
    %1141 = vmatprep.subr.mxu0 0.0
    %1142 = vmatpush1.msra.mxu0 0.0
    %1143 = vmatprep.subr.mxu0 0.0
    %1144 = vmatpush1.msra.mxu0 0.0
    %1145 = vmatprep.subr.mxu0 0.0
    %1146 = vmatpush1.msra.mxu0 0.0
    %1147 = vmatprep.subr.mxu0 0.0
    %1148 = vmatpush1.msra.mxu0 0.0
    %1149 = vmatprep.subr.mxu0 0.0
    %1150 = vmatpush1.msra.mxu0 0.0
    %1151 = vmatprep.subr.mxu0 0.0
    %1152 = vmatpush1.msra.mxu0 0.0
    %1153 = vmatprep.subr.mxu0 0.0
    %1154 = vmatpush1.msra.mxu0 0.0
    %1155 = vmatprep.subr.mxu0 0.0
    %1156 = vmatpush1.msra.mxu0 0.0
    %1157 = vmatprep.mubr.f32.mxu0 0.0
    %1158 = vmatmul.mubr.f32.gmra.mrb[0].mxu0 %v1022
    %v1159 = vpop.f32.mrb[0].mxu0
    %v1160 = vadd.f32 %v1090, %v1159
    %v1161 = vpop.f32.mrb[0].mxu0
    %1162 = vdwg.mxu0
    %v1163 = vadd.f32 %v1160, %v304
    %v1164 = vtanh.pop %v1163
    %1165 = vmatprep.subr.mxu0 0.0
    %1166 = vmatpush1.msra.mxu0 %v251
    %1167 = vmatprep.subr.mxu0 0.0
    %1168 = vmatpush1.msra.mxu0 %v252
    %1169 = vmatprep.subr.mxu0 0.0
    %1170 = vmatpush1.msra.mxu0 %v253
    %1171 = vmatprep.subr.mxu0 0.0
    %1172 = vmatpush1.msra.mxu0 %v254
    %1173 = vmatprep.subr.mxu0 0.0
    %1174 = vmatpush1.msra.mxu0 %v255
    %1175 = vmatprep.subr.mxu0 0.0
    %1176 = vmatpush1.msra.mxu0 %v256
    %1177 = vmatprep.subr.mxu0 0.0
    %1178 = vmatpush1.msra.mxu0 %v257
    %1179 = vmatprep.subr.mxu0 0.0
    %1180 = vmatpush1.msra.mxu0 %v258
    %1181 = vmatprep.subr.mxu0 0.0
    %1182 = vmatpush1.msra.mxu0 %v259
    %1183 = vmatprep.subr.mxu0 0.0
    %1184 = vmatpush1.msra.mxu0 %v260
    %1185 = vmatprep.subr.mxu0 0.0
    %1186 = vmatpush1.msra.mxu0 %v261
    %1187 = vmatprep.subr.mxu0 0.0
    %1188 = vmatpush1.msra.mxu0 %v262
    %1189 = vmatprep.subr.mxu0 0.0
    %1190 = vmatpush1.msra.mxu0 %v263
    %1191 = vmatprep.subr.mxu0 0.0
    %1192 = vmatpush1.msra.mxu0 %v264
    %1193 = vmatprep.subr.mxu0 0.0
    %1194 = vmatpush1.msra.mxu0 %v265
    %1195 = vmatprep.subr.mxu0 0.0
    %1196 = vmatpush1.msra.mxu0 %v266
    %1197 = vmatprep.subr.mxu0 0.0
    %1198 = vmatpush1.msra.mxu0 0.0
    %1199 = vmatprep.subr.mxu0 0.0
    %1200 = vmatpush1.msra.mxu0 0.0
    %1201 = vmatprep.subr.mxu0 0.0
    %1202 = vmatpush1.msra.mxu0 0.0
    %1203 = vmatprep.subr.mxu0 0.0
    %1204 = vmatpush1.msra.mxu0 0.0
    %1205 = vmatprep.subr.mxu0 0.0
    %1206 = vmatpush1.msra.mxu0 0.0
    %1207 = vmatprep.subr.mxu0 0.0
    %1208 = vmatpush1.msra.mxu0 0.0
    %1209 = vmatprep.subr.mxu0 0.0
    %1210 = vmatpush1.msra.mxu0 0.0
    %1211 = vmatprep.subr.mxu0 0.0
    %1212 = vmatpush1.msra.mxu0 0.0
    %1213 = vmatprep.subr.mxu0 0.0
    %1214 = vmatpush1.msra.mxu0 0.0
    %1215 = vmatprep.subr.mxu0 0.0
    %1216 = vmatpush1.msra.mxu0 0.0
    %1217 = vmatprep.subr.mxu0 0.0
    %1218 = vmatpush1.msra.mxu0 0.0
    %1219 = vmatprep.subr.mxu0 0.0
    %1220 = vmatpush1.msra.mxu0 0.0
    %1221 = vmatprep.subr.mxu0 0.0
    %1222 = vmatpush1.msra.mxu0 0.0
    %1223 = vmatprep.subr.mxu0 0.0
    %1224 = vmatpush1.msra.mxu0 0.0
    %1225 = vmatprep.subr.mxu0 0.0
    %1226 = vmatpush1.msra.mxu0 0.0
    %1227 = vmatprep.subr.mxu0 0.0
    %1228 = vmatpush1.msra.mxu0 0.0
    %1229 = vmatprep.mubr.f32.mxu0 0.0
    %1230 = vmatmul.mubr.f32.gmra.mrb[0].mxu0 %v1022
    %v1231 = vpop.f32.mrb[0].mxu0
    %v1232 = vadd.f32 0.0, %v1231
    %v1233 = vpop.f32.mrb[0].mxu0
    %1234 = vdwg.mxu0
    %v1235 = vadd.f32 %v233, %v1232
    %v1236 = vtanh.pop %v1235
    %1237 = vmatprep.subr.mxu0 0.0
    %1238 = vmatpush1.msra.mxu0 %v283
    %1239 = vmatprep.subr.mxu0 0.0
    %1240 = vmatpush1.msra.mxu0 %v284
    %1241 = vmatprep.subr.mxu0 0.0
    %1242 = vmatpush1.msra.mxu0 %v285
    %1243 = vmatprep.subr.mxu0 0.0
    %1244 = vmatpush1.msra.mxu0 %v286
    %1245 = vmatprep.subr.mxu0 0.0
    %1246 = vmatpush1.msra.mxu0 %v287
    %1247 = vmatprep.subr.mxu0 0.0
    %1248 = vmatpush1.msra.mxu0 %v288
    %1249 = vmatprep.subr.mxu0 0.0
    %1250 = vmatpush1.msra.mxu0 %v289
    %1251 = vmatprep.subr.mxu0 0.0
    %1252 = vmatpush1.msra.mxu0 %v290
    %1253 = vmatprep.subr.mxu0 0.0
    %1254 = vmatpush1.msra.mxu0 %v291
    %1255 = vmatprep.subr.mxu0 0.0
    %1256 = vmatpush1.msra.mxu0 %v292
    %1257 = vmatprep.subr.mxu0 0.0
    %1258 = vmatpush1.msra.mxu0 %v293
    %1259 = vmatprep.subr.mxu0 0.0
    %1260 = vmatpush1.msra.mxu0 %v294
    %1261 = vmatprep.subr.mxu0 0.0
    %1262 = vmatpush1.msra.mxu0 %v295
    %1263 = vmatprep.subr.mxu0 0.0
    %1264 = vmatpush1.msra.mxu0 %v296
    %1265 = vmatprep.subr.mxu0 0.0
    %1266 = vmatpush1.msra.mxu0 %v297
    %1267 = vmatprep.subr.mxu0 0.0
    %1268 = vmatpush1.msra.mxu0 %v298
    %1269 = vmatprep.subr.mxu0 0.0
    %1270 = vmatpush1.msra.mxu0 0.0
    %1271 = vmatprep.subr.mxu0 0.0
    %1272 = vmatpush1.msra.mxu0 0.0
    %1273 = vmatprep.subr.mxu0 0.0
    %1274 = vmatpush1.msra.mxu0 0.0
    %1275 = vmatprep.subr.mxu0 0.0
    %1276 = vmatpush1.msra.mxu0 0.0
    %1277 = vmatprep.subr.mxu0 0.0
    %1278 = vmatpush1.msra.mxu0 0.0
    %1279 = vmatprep.subr.mxu0 0.0
    %1280 = vmatpush1.msra.mxu0 0.0
    %1281 = vmatprep.subr.mxu0 0.0
    %1282 = vmatpush1.msra.mxu0 0.0
    %1283 = vmatprep.subr.mxu0 0.0
    %1284 = vmatpush1.msra.mxu0 0.0
    %1285 = vmatprep.subr.mxu0 0.0
    %1286 = vmatpush1.msra.mxu0 0.0
    %1287 = vmatprep.subr.mxu0 0.0
    %1288 = vmatpush1.msra.mxu0 0.0
    %1289 = vmatprep.subr.mxu0 0.0
    %1290 = vmatpush1.msra.mxu0 0.0
    %1291 = vmatprep.subr.mxu0 0.0
    %1292 = vmatpush1.msra.mxu0 0.0
    %1293 = vmatprep.subr.mxu0 0.0
    %1294 = vmatpush1.msra.mxu0 0.0
    %1295 = vmatprep.subr.mxu0 0.0
    %1296 = vmatpush1.msra.mxu0 0.0
    %1297 = vmatprep.subr.mxu0 0.0
    %1298 = vmatpush1.msra.mxu0 0.0
    %1299 = vmatprep.subr.mxu0 0.0
    %1300 = vmatpush1.msra.mxu0 0.0
    %1301 = vmatprep.mubr.f32.mxu0 0.0
    %1302 = vmatmul.mubr.f32.gmra.mrb[0].mxu0 %v1164
    %v1303 = vpop.f32.mrb[0].mxu0
    %v1304 = vadd.f32 0.0, %v1303
    %v1305 = vpop.f32.mrb[0].mxu0
    %1306 = vdwg.mxu0
    %1307 = vmatprep.subr.mxu0 0.0
    %1308 = vmatpush1.msra.mxu0 %v267
    %1309 = vmatprep.subr.mxu0 0.0
    %1310 = vmatpush1.msra.mxu0 %v268
    %1311 = vmatprep.subr.mxu0 0.0
    %1312 = vmatpush1.msra.mxu0 %v269
    %1313 = vmatprep.subr.mxu0 0.0
    %1314 = vmatpush1.msra.mxu0 %v270
    %1315 = vmatprep.subr.mxu0 0.0
    %1316 = vmatpush1.msra.mxu0 %v271
    %1317 = vmatprep.subr.mxu0 0.0
    %1318 = vmatpush1.msra.mxu0 %v272
    %1319 = vmatprep.subr.mxu0 0.0
    %1320 = vmatpush1.msra.mxu0 %v273
    %1321 = vmatprep.subr.mxu0 0.0
    %1322 = vmatpush1.msra.mxu0 %v274
    %1323 = vmatprep.subr.mxu0 0.0
    %1324 = vmatpush1.msra.mxu0 %v275
    %1325 = vmatprep.subr.mxu0 0.0
    %1326 = vmatpush1.msra.mxu0 %v276
    %1327 = vmatprep.subr.mxu0 0.0
    %1328 = vmatpush1.msra.mxu0 %v277
    %1329 = vmatprep.subr.mxu0 0.0
    %1330 = vmatpush1.msra.mxu0 %v278
    %1331 = vmatprep.subr.mxu0 0.0
    %1332 = vmatpush1.msra.mxu0 %v279
    %1333 = vmatprep.subr.mxu0 0.0
    %1334 = vmatpush1.msra.mxu0 %v280
    %1335 = vmatprep.subr.mxu0 0.0
    %1336 = vmatpush1.msra.mxu0 %v281
    %1337 = vmatprep.subr.mxu0 0.0
    %1338 = vmatpush1.msra.mxu0 %v282
    %1339 = vmatprep.subr.mxu0 0.0
    %1340 = vmatpush1.msra.mxu0 0.0
    %1341 = vmatprep.subr.mxu0 0.0
    %1342 = vmatpush1.msra.mxu0 0.0
    %1343 = vmatprep.subr.mxu0 0.0
    %1344 = vmatpush1.msra.mxu0 0.0
    %1345 = vmatprep.subr.mxu0 0.0
    %1346 = vmatpush1.msra.mxu0 0.0
    %1347 = vmatprep.subr.mxu0 0.0
    %1348 = vmatpush1.msra.mxu0 0.0
    %1349 = vmatprep.subr.mxu0 0.0
    %1350 = vmatpush1.msra.mxu0 0.0
    %1351 = vmatprep.subr.mxu0 0.0
    %1352 = vmatpush1.msra.mxu0 0.0
    %1353 = vmatprep.subr.mxu0 0.0
    %1354 = vmatpush1.msra.mxu0 0.0
    %1355 = vmatprep.subr.mxu0 0.0
    %1356 = vmatpush1.msra.mxu0 0.0
    %1357 = vmatprep.subr.mxu0 0.0
    %1358 = vmatpush1.msra.mxu0 0.0
    %1359 = vmatprep.subr.mxu0 0.0
    %1360 = vmatpush1.msra.mxu0 0.0
    %1361 = vmatprep.subr.mxu0 0.0
    %1362 = vmatpush1.msra.mxu0 0.0
    %1363 = vmatprep.subr.mxu0 0.0
    %1364 = vmatpush1.msra.mxu0 0.0
    %1365 = vmatprep.subr.mxu0 0.0
    %1366 = vmatpush1.msra.mxu0 0.0
    %1367 = vmatprep.subr.mxu0 0.0
    %1368 = vmatpush1.msra.mxu0 0.0
    %1369 = vmatprep.subr.mxu0 0.0
    %1370 = vmatpush1.msra.mxu0 0.0
    %1371 = vmatprep.mubr.f32.mxu0 0.0
    %1372 = vmatmul.mubr.f32.gmra.mrb[0].mxu0 %v1236
    %v1373 = vpop.f32.mrb[0].mxu0
    %v1374 = vadd.f32 %v1304, %v1373
    %v1375 = vpop.f32.mrb[0].mxu0
    %1376 = vdwg.mxu0
    %v1377 = vadd.f32 %v1374, %v304
    %v1378 = vtanh.pop %v1377
    %1379 = vmatprep.subr.mxu0 0.0
    %1380 = vmatpush1.msra.mxu0 %v251
    %1381 = vmatprep.subr.mxu0 0.0
    %1382 = vmatpush1.msra.mxu0 %v252
    %1383 = vmatprep.subr.mxu0 0.0
    %1384 = vmatpush1.msra.mxu0 %v253
    %1385 = vmatprep.subr.mxu0 0.0
    %1386 = vmatpush1.msra.mxu0 %v254
    %1387 = vmatprep.subr.mxu0 0.0
    %1388 = vmatpush1.msra.mxu0 %v255
    %1389 = vmatprep.subr.mxu0 0.0
    %1390 = vmatpush1.msra.mxu0 %v256
    %1391 = vmatprep.subr.mxu0 0.0
    %1392 = vmatpush1.msra.mxu0 %v257
    %1393 = vmatprep.subr.mxu0 0.0
    %1394 = vmatpush1.msra.mxu0 %v258
    %1395 = vmatprep.subr.mxu0 0.0
    %1396 = vmatpush1.msra.mxu0 %v259
    %1397 = vmatprep.subr.mxu0 0.0
    %1398 = vmatpush1.msra.mxu0 %v260
    %1399 = vmatprep.subr.mxu0 0.0
    %1400 = vmatpush1.msra.mxu0 %v261
    %1401 = vmatprep.subr.mxu0 0.0
    %1402 = vmatpush1.msra.mxu0 %v262
    %1403 = vmatprep.subr.mxu0 0.0
    %1404 = vmatpush1.msra.mxu0 %v263
    %1405 = vmatprep.subr.mxu0 0.0
    %1406 = vmatpush1.msra.mxu0 %v264
    %1407 = vmatprep.subr.mxu0 0.0
    %1408 = vmatpush1.msra.mxu0 %v265
    %1409 = vmatprep.subr.mxu0 0.0
    %1410 = vmatpush1.msra.mxu0 %v266
    %1411 = vmatprep.subr.mxu0 0.0
    %1412 = vmatpush1.msra.mxu0 0.0
    %1413 = vmatprep.subr.mxu0 0.0
    %1414 = vmatpush1.msra.mxu0 0.0
    %1415 = vmatprep.subr.mxu0 0.0
    %1416 = vmatpush1.msra.mxu0 0.0
    %1417 = vmatprep.subr.mxu0 0.0
    %1418 = vmatpush1.msra.mxu0 0.0
    %1419 = vmatprep.subr.mxu0 0.0
    %1420 = vmatpush1.msra.mxu0 0.0
    %1421 = vmatprep.subr.mxu0 0.0
    %1422 = vmatpush1.msra.mxu0 0.0
    %1423 = vmatprep.subr.mxu0 0.0
    %1424 = vmatpush1.msra.mxu0 0.0
    %1425 = vmatprep.subr.mxu0 0.0
    %1426 = vmatpush1.msra.mxu0 0.0
    %1427 = vmatprep.subr.mxu0 0.0
    %1428 = vmatpush1.msra.mxu0 0.0
    %1429 = vmatprep.subr.mxu0 0.0
    %1430 = vmatpush1.msra.mxu0 0.0
    %1431 = vmatprep.subr.mxu0 0.0
    %1432 = vmatpush1.msra.mxu0 0.0
    %1433 = vmatprep.subr.mxu0 0.0
    %1434 = vmatpush1.msra.mxu0 0.0
    %1435 = vmatprep.subr.mxu0 0.0
    %1436 = vmatpush1.msra.mxu0 0.0
    %1437 = vmatprep.subr.mxu0 0.0
    %1438 = vmatpush1.msra.mxu0 0.0
    %1439 = vmatprep.subr.mxu0 0.0
    %1440 = vmatpush1.msra.mxu0 0.0
    %1441 = vmatprep.subr.mxu0 0.0
    %1442 = vmatpush1.msra.mxu0 0.0
    %1443 = vmatprep.mubr.f32.mxu0 0.0
    %1444 = vmatmul.mubr.f32.gmra.mrb[0].mxu0 %v1236
    %v1445 = vpop.f32.mrb[0].mxu0
    %v1446 = vadd.f32 0.0, %v1445
    %v1447 = vpop.f32.mrb[0].mxu0
    %1448 = vdwg.mxu0
    %v1449 = vadd.f32 %v238, %v1446
    %v1450 = vtanh.pop %v1449
    %1451 = vmatprep.subr.mxu0 0.0
    %1452 = vmatpush1.msra.mxu0 %v283
    %1453 = vmatprep.subr.mxu0 0.0
    %1454 = vmatpush1.msra.mxu0 %v284
    %1455 = vmatprep.subr.mxu0 0.0
    %1456 = vmatpush1.msra.mxu0 %v285
    %1457 = vmatprep.subr.mxu0 0.0
    %1458 = vmatpush1.msra.mxu0 %v286
    %1459 = vmatprep.subr.mxu0 0.0
    %1460 = vmatpush1.msra.mxu0 %v287
    %1461 = vmatprep.subr.mxu0 0.0
    %1462 = vmatpush1.msra.mxu0 %v288
    %1463 = vmatprep.subr.mxu0 0.0
    %1464 = vmatpush1.msra.mxu0 %v289
    %1465 = vmatprep.subr.mxu0 0.0
    %1466 = vmatpush1.msra.mxu0 %v290
    %1467 = vmatprep.subr.mxu0 0.0
    %1468 = vmatpush1.msra.mxu0 %v291
    %1469 = vmatprep.subr.mxu0 0.0
    %1470 = vmatpush1.msra.mxu0 %v292
    %1471 = vmatprep.subr.mxu0 0.0
    %1472 = vmatpush1.msra.mxu0 %v293
    %1473 = vmatprep.subr.mxu0 0.0
    %1474 = vmatpush1.msra.mxu0 %v294
    %1475 = vmatprep.subr.mxu0 0.0
    %1476 = vmatpush1.msra.mxu0 %v295
    %1477 = vmatprep.subr.mxu0 0.0
    %1478 = vmatpush1.msra.mxu0 %v296
    %1479 = vmatprep.subr.mxu0 0.0
    %1480 = vmatpush1.msra.mxu0 %v297
    %1481 = vmatprep.subr.mxu0 0.0
    %1482 = vmatpush1.msra.mxu0 %v298
    %1483 = vmatprep.subr.mxu0 0.0
    %1484 = vmatpush1.msra.mxu0 0.0
    %1485 = vmatprep.subr.mxu0 0.0
    %1486 = vmatpush1.msra.mxu0 0.0
    %1487 = vmatprep.subr.mxu0 0.0
    %1488 = vmatpush1.msra.mxu0 0.0
    %1489 = vmatprep.subr.mxu0 0.0
    %1490 = vmatpush1.msra.mxu0 0.0
    %1491 = vmatprep.subr.mxu0 0.0
    %1492 = vmatpush1.msra.mxu0 0.0
    %1493 = vmatprep.subr.mxu0 0.0
    %1494 = vmatpush1.msra.mxu0 0.0
    %1495 = vmatprep.subr.mxu0 0.0
    %1496 = vmatpush1.msra.mxu0 0.0
    %1497 = vmatprep.subr.mxu0 0.0
    %1498 = vmatpush1.msra.mxu0 0.0
    %1499 = vmatprep.subr.mxu0 0.0
    %1500 = vmatpush1.msra.mxu0 0.0
    %1501 = vmatprep.subr.mxu0 0.0
    %1502 = vmatpush1.msra.mxu0 0.0
    %1503 = vmatprep.subr.mxu0 0.0
    %1504 = vmatpush1.msra.mxu0 0.0
    %1505 = vmatprep.subr.mxu0 0.0
    %1506 = vmatpush1.msra.mxu0 0.0
    %1507 = vmatprep.subr.mxu0 0.0
    %1508 = vmatpush1.msra.mxu0 0.0
    %1509 = vmatprep.subr.mxu0 0.0
    %1510 = vmatpush1.msra.mxu0 0.0
    %1511 = vmatprep.subr.mxu0 0.0
    %1512 = vmatpush1.msra.mxu0 0.0
    %1513 = vmatprep.subr.mxu0 0.0
    %1514 = vmatpush1.msra.mxu0 0.0
    %1515 = vmatprep.mubr.f32.mxu0 0.0
    %1516 = vmatmul.mubr.f32.gmra.mrb[0].mxu0 %v1378
    %v1517 = vpop.f32.mrb[0].mxu0
    %v1518 = vadd.f32 0.0, %v1517
    %v1519 = vpop.f32.mrb[0].mxu0
    %1520 = vdwg.mxu0
    %1521 = vmatprep.subr.mxu0 0.0
    %1522 = vmatpush1.msra.mxu0 %v267
    %1523 = vmatprep.subr.mxu0 0.0
    %1524 = vmatpush1.msra.mxu0 %v268
    %1525 = vmatprep.subr.mxu0 0.0
    %1526 = vmatpush1.msra.mxu0 %v269
    %1527 = vmatprep.subr.mxu0 0.0
    %1528 = vmatpush1.msra.mxu0 %v270
    %1529 = vmatprep.subr.mxu0 0.0
    %1530 = vmatpush1.msra.mxu0 %v271
    %1531 = vmatprep.subr.mxu0 0.0
    %1532 = vmatpush1.msra.mxu0 %v272
    %1533 = vmatprep.subr.mxu0 0.0
    %1534 = vmatpush1.msra.mxu0 %v273
    %1535 = vmatprep.subr.mxu0 0.0
    %1536 = vmatpush1.msra.mxu0 %v274
    %1537 = vmatprep.subr.mxu0 0.0
    %1538 = vmatpush1.msra.mxu0 %v275
    %1539 = vmatprep.subr.mxu0 0.0
    %1540 = vmatpush1.msra.mxu0 %v276
    %1541 = vmatprep.subr.mxu0 0.0
    %1542 = vmatpush1.msra.mxu0 %v277
    %1543 = vmatprep.subr.mxu0 0.0
    %1544 = vmatpush1.msra.mxu0 %v278
    %1545 = vmatprep.subr.mxu0 0.0
    %1546 = vmatpush1.msra.mxu0 %v279
    %1547 = vmatprep.subr.mxu0 0.0
    %1548 = vmatpush1.msra.mxu0 %v280
    %1549 = vmatprep.subr.mxu0 0.0
    %1550 = vmatpush1.msra.mxu0 %v281
    %1551 = vmatprep.subr.mxu0 0.0
    %1552 = vmatpush1.msra.mxu0 %v282
    %1553 = vmatprep.subr.mxu0 0.0
    %1554 = vmatpush1.msra.mxu0 0.0
    %1555 = vmatprep.subr.mxu0 0.0
    %1556 = vmatpush1.msra.mxu0 0.0
    %1557 = vmatprep.subr.mxu0 0.0
    %1558 = vmatpush1.msra.mxu0 0.0
    %1559 = vmatprep.subr.mxu0 0.0
    %1560 = vmatpush1.msra.mxu0 0.0
    %1561 = vmatprep.subr.mxu0 0.0
    %1562 = vmatpush1.msra.mxu0 0.0
    %1563 = vmatprep.subr.mxu0 0.0
    %1564 = vmatpush1.msra.mxu0 0.0
    %1565 = vmatprep.subr.mxu0 0.0
    %1566 = vmatpush1.msra.mxu0 0.0
    %1567 = vmatprep.subr.mxu0 0.0
    %1568 = vmatpush1.msra.mxu0 0.0
    %1569 = vmatprep.subr.mxu0 0.0
    %1570 = vmatpush1.msra.mxu0 0.0
    %1571 = vmatprep.subr.mxu0 0.0
    %1572 = vmatpush1.msra.mxu0 0.0
    %1573 = vmatprep.subr.mxu0 0.0
    %1574 = vmatpush1.msra.mxu0 0.0
    %1575 = vmatprep.subr.mxu0 0.0
    %1576 = vmatpush1.msra.mxu0 0.0
    %1577 = vmatprep.subr.mxu0 0.0
    %1578 = vmatpush1.msra.mxu0 0.0
    %1579 = vmatprep.subr.mxu0 0.0
    %1580 = vmatpush1.msra.mxu0 0.0
    %1581 = vmatprep.subr.mxu0 0.0
    %1582 = vmatpush1.msra.mxu0 0.0
    %1583 = vmatprep.subr.mxu0 0.0
    %1584 = vmatpush1.msra.mxu0 0.0
    %1585 = vmatprep.mubr.f32.mxu0 0.0
    %1586 = vmatmul.mubr.f32.gmra.mrb[0].mxu0 %v1450
    %v1587 = vpop.f32.mrb[0].mxu0
    %v1588 = vadd.f32 %v1518, %v1587
    %v1589 = vpop.f32.mrb[0].mxu0
    %1590 = vdwg.mxu0
    %v1591 = vadd.f32 %v1588, %v304
    %v1592 = vtanh.pop %v1591
    %1593 = vmatprep.subr.mxu0 0.0
    %1594 = vmatpush1.msra.mxu0 %v251
    %1595 = vmatprep.subr.mxu0 0.0
    %1596 = vmatpush1.msra.mxu0 %v252
    %1597 = vmatprep.subr.mxu0 0.0
    %1598 = vmatpush1.msra.mxu0 %v253
    %1599 = vmatprep.subr.mxu0 0.0
    %1600 = vmatpush1.msra.mxu0 %v254
    %1601 = vmatprep.subr.mxu0 0.0
    %1602 = vmatpush1.msra.mxu0 %v255
    %1603 = vmatprep.subr.mxu0 0.0
    %1604 = vmatpush1.msra.mxu0 %v256
    %1605 = vmatprep.subr.mxu0 0.0
    %1606 = vmatpush1.msra.mxu0 %v257
    %1607 = vmatprep.subr.mxu0 0.0
    %1608 = vmatpush1.msra.mxu0 %v258
    %1609 = vmatprep.subr.mxu0 0.0
    %1610 = vmatpush1.msra.mxu0 %v259
    %1611 = vmatprep.subr.mxu0 0.0
    %1612 = vmatpush1.msra.mxu0 %v260
    %1613 = vmatprep.subr.mxu0 0.0
    %1614 = vmatpush1.msra.mxu0 %v261
    %1615 = vmatprep.subr.mxu0 0.0
    %1616 = vmatpush1.msra.mxu0 %v262
    %1617 = vmatprep.subr.mxu0 0.0
    %1618 = vmatpush1.msra.mxu0 %v263
    %1619 = vmatprep.subr.mxu0 0.0
    %1620 = vmatpush1.msra.mxu0 %v264
    %1621 = vmatprep.subr.mxu0 0.0
    %1622 = vmatpush1.msra.mxu0 %v265
    %1623 = vmatprep.subr.mxu0 0.0
    %1624 = vmatpush1.msra.mxu0 %v266
    %1625 = vmatprep.subr.mxu0 0.0
    %1626 = vmatpush1.msra.mxu0 0.0
    %1627 = vmatprep.subr.mxu0 0.0
    %1628 = vmatpush1.msra.mxu0 0.0
    %1629 = vmatprep.subr.mxu0 0.0
    %1630 = vmatpush1.msra.mxu0 0.0
    %1631 = vmatprep.subr.mxu0 0.0
    %1632 = vmatpush1.msra.mxu0 0.0
    %1633 = vmatprep.subr.mxu0 0.0
    %1634 = vmatpush1.msra.mxu0 0.0
    %1635 = vmatprep.subr.mxu0 0.0
    %1636 = vmatpush1.msra.mxu0 0.0
    %1637 = vmatprep.subr.mxu0 0.0
    %1638 = vmatpush1.msra.mxu0 0.0
    %1639 = vmatprep.subr.mxu0 0.0
    %1640 = vmatpush1.msra.mxu0 0.0
    %1641 = vmatprep.subr.mxu0 0.0
    %1642 = vmatpush1.msra.mxu0 0.0
    %1643 = vmatprep.subr.mxu0 0.0
    %1644 = vmatpush1.msra.mxu0 0.0
    %1645 = vmatprep.subr.mxu0 0.0
    %1646 = vmatpush1.msra.mxu0 0.0
    %1647 = vmatprep.subr.mxu0 0.0
    %1648 = vmatpush1.msra.mxu0 0.0
    %1649 = vmatprep.subr.mxu0 0.0
    %1650 = vmatpush1.msra.mxu0 0.0
    %1651 = vmatprep.subr.mxu0 0.0
    %1652 = vmatpush1.msra.mxu0 0.0
    %1653 = vmatprep.subr.mxu0 0.0
    %1654 = vmatpush1.msra.mxu0 0.0
    %1655 = vmatprep.subr.mxu0 0.0
    %1656 = vmatpush1.msra.mxu0 0.0
    %1657 = vmatprep.mubr.f32.mxu0 0.0
    %1658 = vmatmul.mubr.f32.gmra.mrb[0].mxu0 %v1450
    %v1659 = vpop.f32.mrb[0].mxu0
    %v1660 = vadd.f32 0.0, %v1659
    %v1661 = vpop.f32.mrb[0].mxu0
    %1662 = vdwg.mxu0
    %v1663 = vadd.f32 %v243, %v1660
    %v1664 = vtanh.pop %v1663
    %1665 = vmatprep.subr.mxu0 0.0
    %1666 = vmatpush1.msra.mxu0 %v283
    %1667 = vmatprep.subr.mxu0 0.0
    %1668 = vmatpush1.msra.mxu0 %v284
    %1669 = vmatprep.subr.mxu0 0.0
    %1670 = vmatpush1.msra.mxu0 %v285
    %1671 = vmatprep.subr.mxu0 0.0
    %1672 = vmatpush1.msra.mxu0 %v286
    %1673 = vmatprep.subr.mxu0 0.0
    %1674 = vmatpush1.msra.mxu0 %v287
    %1675 = vmatprep.subr.mxu0 0.0
    %1676 = vmatpush1.msra.mxu0 %v288
    %1677 = vmatprep.subr.mxu0 0.0
    %1678 = vmatpush1.msra.mxu0 %v289
    %1679 = vmatprep.subr.mxu0 0.0
    %1680 = vmatpush1.msra.mxu0 %v290
    %1681 = vmatprep.subr.mxu0 0.0
    %1682 = vmatpush1.msra.mxu0 %v291
    %1683 = vmatprep.subr.mxu0 0.0
    %1684 = vmatpush1.msra.mxu0 %v292
    %1685 = vmatprep.subr.mxu0 0.0
    %1686 = vmatpush1.msra.mxu0 %v293
    %1687 = vmatprep.subr.mxu0 0.0
    %1688 = vmatpush1.msra.mxu0 %v294
    %1689 = vmatprep.subr.mxu0 0.0
    %1690 = vmatpush1.msra.mxu0 %v295
    %1691 = vmatprep.subr.mxu0 0.0
    %1692 = vmatpush1.msra.mxu0 %v296
    %1693 = vmatprep.subr.mxu0 0.0
    %1694 = vmatpush1.msra.mxu0 %v297
    %1695 = vmatprep.subr.mxu0 0.0
    %1696 = vmatpush1.msra.mxu0 %v298
    %1697 = vmatprep.subr.mxu0 0.0
    %1698 = vmatpush1.msra.mxu0 0.0
    %1699 = vmatprep.subr.mxu0 0.0
    %1700 = vmatpush1.msra.mxu0 0.0
    %1701 = vmatprep.subr.mxu0 0.0
    %1702 = vmatpush1.msra.mxu0 0.0
    %1703 = vmatprep.subr.mxu0 0.0
    %1704 = vmatpush1.msra.mxu0 0.0
    %1705 = vmatprep.subr.mxu0 0.0
    %1706 = vmatpush1.msra.mxu0 0.0
    %1707 = vmatprep.subr.mxu0 0.0
    %1708 = vmatpush1.msra.mxu0 0.0
    %1709 = vmatprep.subr.mxu0 0.0
    %1710 = vmatpush1.msra.mxu0 0.0
    %1711 = vmatprep.subr.mxu0 0.0
    %1712 = vmatpush1.msra.mxu0 0.0
    %1713 = vmatprep.subr.mxu0 0.0
    %1714 = vmatpush1.msra.mxu0 0.0
    %1715 = vmatprep.subr.mxu0 0.0
    %1716 = vmatpush1.msra.mxu0 0.0
    %1717 = vmatprep.subr.mxu0 0.0
    %1718 = vmatpush1.msra.mxu0 0.0
    %1719 = vmatprep.subr.mxu0 0.0
    %1720 = vmatpush1.msra.mxu0 0.0
    %1721 = vmatprep.subr.mxu0 0.0
    %1722 = vmatpush1.msra.mxu0 0.0
    %1723 = vmatprep.subr.mxu0 0.0
    %1724 = vmatpush1.msra.mxu0 0.0
    %1725 = vmatprep.subr.mxu0 0.0
    %1726 = vmatpush1.msra.mxu0 0.0
    %1727 = vmatprep.subr.mxu0 0.0
    %1728 = vmatpush1.msra.mxu0 0.0
    %1729 = vmatprep.mubr.f32.mxu0 0.0
    %1730 = vmatmul.mubr.f32.gmra.mrb[0].mxu0 %v1592
    %v1731 = vpop.f32.mrb[0].mxu0
    %v1732 = vadd.f32 0.0, %v1731
    %v1733 = vpop.f32.mrb[0].mxu0
    %1734 = vdwg.mxu0
    %1735 = vmatprep.subr.mxu0 0.0
    %1736 = vmatpush1.msra.mxu0 %v267
    %1737 = vmatprep.subr.mxu0 0.0
    %1738 = vmatpush1.msra.mxu0 %v268
    %1739 = vmatprep.subr.mxu0 0.0
    %1740 = vmatpush1.msra.mxu0 %v269
    %1741 = vmatprep.subr.mxu0 0.0
    %1742 = vmatpush1.msra.mxu0 %v270
    %1743 = vmatprep.subr.mxu0 0.0
    %1744 = vmatpush1.msra.mxu0 %v271
    %1745 = vmatprep.subr.mxu0 0.0
    %1746 = vmatpush1.msra.mxu0 %v272
    %1747 = vmatprep.subr.mxu0 0.0
    %1748 = vmatpush1.msra.mxu0 %v273
    %1749 = vmatprep.subr.mxu0 0.0
    %1750 = vmatpush1.msra.mxu0 %v274
    %1751 = vmatprep.subr.mxu0 0.0
    %1752 = vmatpush1.msra.mxu0 %v275
    %1753 = vmatprep.subr.mxu0 0.0
    %1754 = vmatpush1.msra.mxu0 %v276
    %1755 = vmatprep.subr.mxu0 0.0
    %1756 = vmatpush1.msra.mxu0 %v277
    %1757 = vmatprep.subr.mxu0 0.0
    %1758 = vmatpush1.msra.mxu0 %v278
    %1759 = vmatprep.subr.mxu0 0.0
    %1760 = vmatpush1.msra.mxu0 %v279
    %1761 = vmatprep.subr.mxu0 0.0
    %1762 = vmatpush1.msra.mxu0 %v280
    %1763 = vmatprep.subr.mxu0 0.0
    %1764 = vmatpush1.msra.mxu0 %v281
    %1765 = vmatprep.subr.mxu0 0.0
    %1766 = vmatpush1.msra.mxu0 %v282
    %1767 = vmatprep.subr.mxu0 0.0
    %1768 = vmatpush1.msra.mxu0 0.0
    %1769 = vmatprep.subr.mxu0 0.0
    %1770 = vmatpush1.msra.mxu0 0.0
    %1771 = vmatprep.subr.mxu0 0.0
    %1772 = vmatpush1.msra.mxu0 0.0
    %1773 = vmatprep.subr.mxu0 0.0
    %1774 = vmatpush1.msra.mxu0 0.0
    %1775 = vmatprep.subr.mxu0 0.0
    %1776 = vmatpush1.msra.mxu0 0.0
    %1777 = vmatprep.subr.mxu0 0.0
    %1778 = vmatpush1.msra.mxu0 0.0
    %1779 = vmatprep.subr.mxu0 0.0
    %1780 = vmatpush1.msra.mxu0 0.0
    %1781 = vmatprep.subr.mxu0 0.0
    %1782 = vmatpush1.msra.mxu0 0.0
    %1783 = vmatprep.subr.mxu0 0.0
    %1784 = vmatpush1.msra.mxu0 0.0
    %1785 = vmatprep.subr.mxu0 0.0
    %1786 = vmatpush1.msra.mxu0 0.0
    %1787 = vmatprep.subr.mxu0 0.0
    %1788 = vmatpush1.msra.mxu0 0.0
    %1789 = vmatprep.subr.mxu0 0.0
    %1790 = vmatpush1.msra.mxu0 0.0
    %1791 = vmatprep.subr.mxu0 0.0
    %1792 = vmatpush1.msra.mxu0 0.0
    %1793 = vmatprep.subr.mxu0 0.0
    %1794 = vmatpush1.msra.mxu0 0.0
    %1795 = vmatprep.subr.mxu0 0.0
    %1796 = vmatpush1.msra.mxu0 0.0
    %1797 = vmatprep.subr.mxu0 0.0
    %1798 = vmatpush1.msra.mxu0 0.0
    %1799 = vmatprep.mubr.f32.mxu0 0.0
    %1800 = vmatmul.mubr.f32.gmra.mrb[0].mxu0 %v1664
    %v1801 = vpop.f32.mrb[0].mxu0
    %v1802 = vadd.f32 %v1732, %v1801
    %v1803 = vpop.f32.mrb[0].mxu0
    %1804 = vdwg.mxu0
    %v1805 = vadd.f32 %v1802, %v304
    %v1806 = vtanh.pop %v1805
    %1807 = vmatprep.subr.mxu0 0.0
    %1808 = vmatpush1.msra.mxu0 %v251
    %1809 = vmatprep.subr.mxu0 0.0
    %1810 = vmatpush1.msra.mxu0 %v252
    %1811 = vmatprep.subr.mxu0 0.0
    %1812 = vmatpush1.msra.mxu0 %v253
    %1813 = vmatprep.subr.mxu0 0.0
    %1814 = vmatpush1.msra.mxu0 %v254
    %1815 = vmatprep.subr.mxu0 0.0
    %1816 = vmatpush1.msra.mxu0 %v255
    %1817 = vmatprep.subr.mxu0 0.0
    %1818 = vmatpush1.msra.mxu0 %v256
    %1819 = vmatprep.subr.mxu0 0.0
    %1820 = vmatpush1.msra.mxu0 %v257
    %1821 = vmatprep.subr.mxu0 0.0
    %1822 = vmatpush1.msra.mxu0 %v258
    %1823 = vmatprep.subr.mxu0 0.0
    %1824 = vmatpush1.msra.mxu0 %v259
    %1825 = vmatprep.subr.mxu0 0.0
    %1826 = vmatpush1.msra.mxu0 %v260
    %1827 = vmatprep.subr.mxu0 0.0
    %1828 = vmatpush1.msra.mxu0 %v261
    %1829 = vmatprep.subr.mxu0 0.0
    %1830 = vmatpush1.msra.mxu0 %v262
    %1831 = vmatprep.subr.mxu0 0.0
    %1832 = vmatpush1.msra.mxu0 %v263
    %1833 = vmatprep.subr.mxu0 0.0
    %1834 = vmatpush1.msra.mxu0 %v264
    %1835 = vmatprep.subr.mxu0 0.0
    %1836 = vmatpush1.msra.mxu0 %v265
    %1837 = vmatprep.subr.mxu0 0.0
    %1838 = vmatpush1.msra.mxu0 %v266
    %1839 = vmatprep.subr.mxu0 0.0
    %1840 = vmatpush1.msra.mxu0 0.0
    %1841 = vmatprep.subr.mxu0 0.0
    %1842 = vmatpush1.msra.mxu0 0.0
    %1843 = vmatprep.subr.mxu0 0.0
    %1844 = vmatpush1.msra.mxu0 0.0
    %1845 = vmatprep.subr.mxu0 0.0
    %1846 = vmatpush1.msra.mxu0 0.0
    %1847 = vmatprep.subr.mxu0 0.0
    %1848 = vmatpush1.msra.mxu0 0.0
    %1849 = vmatprep.subr.mxu0 0.0
    %1850 = vmatpush1.msra.mxu0 0.0
    %1851 = vmatprep.subr.mxu0 0.0
    %1852 = vmatpush1.msra.mxu0 0.0
    %1853 = vmatprep.subr.mxu0 0.0
    %1854 = vmatpush1.msra.mxu0 0.0
    %1855 = vmatprep.subr.mxu0 0.0
    %1856 = vmatpush1.msra.mxu0 0.0
    %1857 = vmatprep.subr.mxu0 0.0
    %1858 = vmatpush1.msra.mxu0 0.0
    %1859 = vmatprep.subr.mxu0 0.0
    %1860 = vmatpush1.msra.mxu0 0.0
    %1861 = vmatprep.subr.mxu0 0.0
    %1862 = vmatpush1.msra.mxu0 0.0
    %1863 = vmatprep.subr.mxu0 0.0
    %1864 = vmatpush1.msra.mxu0 0.0
    %1865 = vmatprep.subr.mxu0 0.0
    %1866 = vmatpush1.msra.mxu0 0.0
    %1867 = vmatprep.subr.mxu0 0.0
    %1868 = vmatpush1.msra.mxu0 0.0
    %1869 = vmatprep.subr.mxu0 0.0
    %1870 = vmatpush1.msra.mxu0 0.0
    %1871 = vmatprep.mubr.f32.mxu0 0.0
    %1872 = vmatmul.mubr.f32.gmra.mrb[0].mxu0 %v1664
    %v1873 = vpop.f32.mrb[0].mxu0
    %v1874 = vadd.f32 0.0, %v1873
    %v1875 = vpop.f32.mrb[0].mxu0
    %1876 = vdwg.mxu0
    %v1877 = vadd.f32 %v248, %v1874
    %v1878 = vtanh.pop %v1877
    %1879 = vmatprep.subr.mxu0 0.0
    %1880 = vmatpush1.msra.mxu0 %v283
    %1881 = vmatprep.subr.mxu0 0.0
    %1882 = vmatpush1.msra.mxu0 %v284
    %1883 = vmatprep.subr.mxu0 0.0
    %1884 = vmatpush1.msra.mxu0 %v285
    %1885 = vmatprep.subr.mxu0 0.0
    %1886 = vmatpush1.msra.mxu0 %v286
    %1887 = vmatprep.subr.mxu0 0.0
    %1888 = vmatpush1.msra.mxu0 %v287
    %1889 = vmatprep.subr.mxu0 0.0
    %1890 = vmatpush1.msra.mxu0 %v288
    %1891 = vmatprep.subr.mxu0 0.0
    %1892 = vmatpush1.msra.mxu0 %v289
    %1893 = vmatprep.subr.mxu0 0.0
    %1894 = vmatpush1.msra.mxu0 %v290
    %1895 = vmatprep.subr.mxu0 0.0
    %1896 = vmatpush1.msra.mxu0 %v291
    %1897 = vmatprep.subr.mxu0 0.0
    %1898 = vmatpush1.msra.mxu0 %v292
    %1899 = vmatprep.subr.mxu0 0.0
    %1900 = vmatpush1.msra.mxu0 %v293
    %1901 = vmatprep.subr.mxu0 0.0
    %1902 = vmatpush1.msra.mxu0 %v294
    %1903 = vmatprep.subr.mxu0 0.0
    %1904 = vmatpush1.msra.mxu0 %v295
    %1905 = vmatprep.subr.mxu0 0.0
    %1906 = vmatpush1.msra.mxu0 %v296
    %1907 = vmatprep.subr.mxu0 0.0
    %1908 = vmatpush1.msra.mxu0 %v297
    %1909 = vmatprep.subr.mxu0 0.0
    %1910 = vmatpush1.msra.mxu0 %v298
    %1911 = vmatprep.subr.mxu0 0.0
    %1912 = vmatpush1.msra.mxu0 0.0
    %1913 = vmatprep.subr.mxu0 0.0
    %1914 = vmatpush1.msra.mxu0 0.0
    %1915 = vmatprep.subr.mxu0 0.0
    %1916 = vmatpush1.msra.mxu0 0.0
    %1917 = vmatprep.subr.mxu0 0.0
    %1918 = vmatpush1.msra.mxu0 0.0
    %1919 = vmatprep.subr.mxu0 0.0
    %1920 = vmatpush1.msra.mxu0 0.0
    %1921 = vmatprep.subr.mxu0 0.0
    %1922 = vmatpush1.msra.mxu0 0.0
    %1923 = vmatprep.subr.mxu0 0.0
    %1924 = vmatpush1.msra.mxu0 0.0
    %1925 = vmatprep.subr.mxu0 0.0
    %1926 = vmatpush1.msra.mxu0 0.0
    %1927 = vmatprep.subr.mxu0 0.0
    %1928 = vmatpush1.msra.mxu0 0.0
    %1929 = vmatprep.subr.mxu0 0.0
    %1930 = vmatpush1.msra.mxu0 0.0
    %1931 = vmatprep.subr.mxu0 0.0
    %1932 = vmatpush1.msra.mxu0 0.0
    %1933 = vmatprep.subr.mxu0 0.0
    %1934 = vmatpush1.msra.mxu0 0.0
    %1935 = vmatprep.subr.mxu0 0.0
    %1936 = vmatpush1.msra.mxu0 0.0
    %1937 = vmatprep.subr.mxu0 0.0
    %1938 = vmatpush1.msra.mxu0 0.0
    %1939 = vmatprep.subr.mxu0 0.0
    %1940 = vmatpush1.msra.mxu0 0.0
    %1941 = vmatprep.subr.mxu0 0.0
    %1942 = vmatpush1.msra.mxu0 0.0
    %1943 = vmatprep.mubr.f32.mxu0 0.0
    %1944 = vmatmul.mubr.f32.gmra.mrb[0].mxu0 %v1806
    %v1945 = vpop.f32.mrb[0].mxu0
    %v1946 = vadd.f32 0.0, %v1945
    %v1947 = vpop.f32.mrb[0].mxu0
    %1948 = vdwg.mxu0
    %1949 = vmatprep.subr.mxu0 0.0
    %1950 = vmatpush1.msra.mxu0 %v267
    %1951 = vmatprep.subr.mxu0 0.0
    %1952 = vmatpush1.msra.mxu0 %v268
    %1953 = vmatprep.subr.mxu0 0.0
    %1954 = vmatpush1.msra.mxu0 %v269
    %1955 = vmatprep.subr.mxu0 0.0
    %1956 = vmatpush1.msra.mxu0 %v270
    %1957 = vmatprep.subr.mxu0 0.0
    %1958 = vmatpush1.msra.mxu0 %v271
    %1959 = vmatprep.subr.mxu0 0.0
    %1960 = vmatpush1.msra.mxu0 %v272
    %1961 = vmatprep.subr.mxu0 0.0
    %1962 = vmatpush1.msra.mxu0 %v273
    %1963 = vmatprep.subr.mxu0 0.0
    %1964 = vmatpush1.msra.mxu0 %v274
    %1965 = vmatprep.subr.mxu0 0.0
    %1966 = vmatpush1.msra.mxu0 %v275
    %1967 = vmatprep.subr.mxu0 0.0
    %1968 = vmatpush1.msra.mxu0 %v276
    %1969 = vmatprep.subr.mxu0 0.0
    %1970 = vmatpush1.msra.mxu0 %v277
    %1971 = vmatprep.subr.mxu0 0.0
    %1972 = vmatpush1.msra.mxu0 %v278
    %1973 = vmatprep.subr.mxu0 0.0
    %1974 = vmatpush1.msra.mxu0 %v279
    %1975 = vmatprep.subr.mxu0 0.0
    %1976 = vmatpush1.msra.mxu0 %v280
    %1977 = vmatprep.subr.mxu0 0.0
    %1978 = vmatpush1.msra.mxu0 %v281
    %1979 = vmatprep.subr.mxu0 0.0
    %1980 = vmatpush1.msra.mxu0 %v282
    %1981 = vmatprep.subr.mxu0 0.0
    %1982 = vmatpush1.msra.mxu0 0.0
    %1983 = vmatprep.subr.mxu0 0.0
    %1984 = vmatpush1.msra.mxu0 0.0
    %1985 = vmatprep.subr.mxu0 0.0
    %1986 = vmatpush1.msra.mxu0 0.0
    %1987 = vmatprep.subr.mxu0 0.0
    %1988 = vmatpush1.msra.mxu0 0.0
    %1989 = vmatprep.subr.mxu0 0.0
    %1990 = vmatpush1.msra.mxu0 0.0
    %1991 = vmatprep.subr.mxu0 0.0
    %1992 = vmatpush1.msra.mxu0 0.0
    %1993 = vmatprep.subr.mxu0 0.0
    %1994 = vmatpush1.msra.mxu0 0.0
    %1995 = vmatprep.subr.mxu0 0.0
    %1996 = vmatpush1.msra.mxu0 0.0
    %1997 = vmatprep.subr.mxu0 0.0
    %1998 = vmatpush1.msra.mxu0 0.0
    %1999 = vmatprep.subr.mxu0 0.0
    %2000 = vmatpush1.msra.mxu0 0.0
    %2001 = vmatprep.subr.mxu0 0.0
    %2002 = vmatpush1.msra.mxu0 0.0
    %2003 = vmatprep.subr.mxu0 0.0
    %2004 = vmatpush1.msra.mxu0 0.0
    %2005 = vmatprep.subr.mxu0 0.0
    %2006 = vmatpush1.msra.mxu0 0.0
    %2007 = vmatprep.subr.mxu0 0.0
    %2008 = vmatpush1.msra.mxu0 0.0
    %2009 = vmatprep.subr.mxu0 0.0
    %2010 = vmatpush1.msra.mxu0 0.0
    %2011 = vmatprep.subr.mxu0 0.0
    %2012 = vmatpush1.msra.mxu0 0.0
    %2013 = vmatprep.mubr.f32.mxu0 0.0
    %2014 = vmatmul.mubr.f32.gmra.mrb[0].mxu0 %v1878
    %v2015 = vpop.f32.mrb[0].mxu0
    %v2016 = vadd.f32 %v1946, %v2015
    %v2017 = vpop.f32.mrb[0].mxu0
    %2018 = vdwg.mxu0
    %v2019 = vadd.f32 %v2016, %v304
    %v2020 = vtanh.pop %v2019
    %2021 = vst [vmem:[#allocation11] sm:$0xff] %v522
    %2022 = vst [vmem:[#allocation11 + $0x8] sm:$0xff] %v736
    %2023 = vst [vmem:[#allocation11 + $0x10] sm:$0xff] %v950
    %2024 = vst [vmem:[#allocation11 + $0x18] sm:$0xff] %v1164
    %2025 = vst [vmem:[#allocation11 + $0x20] sm:$0xff] %v1378
    %2026 = vst [vmem:[#allocation11 + $0x28] sm:$0xff] %v1592
    %2027 = vst [vmem:[#allocation11 + $0x30] sm:$0xff] %v1806
    %2028 = vst [vmem:[#allocation11 + $0x38] sm:$0xff] %v2020
    %2029 = vst [vmem:[#allocation12] sm:$0xff] %v1878
    %2030 = vst [vmem:[#allocation12 + $0x8] sm:$0xff] %v2020
    // Predicated region
    $region54: #{tpu_custom_call.1} parent=1 // pred_check
      _
    $region55: #{tpu_custom_call.1} parent=1 // pred_check_branch
      %2032 = sbr.rel (0) target = $region57
    $region56: #{tpu_custom_call.1} parent=1 // pred_region
      %s2034 = ssub.s32 1024, 1024
      %2035 = vsyncadd [#allocation4], %s2034
      %s2036 = sshll.u32 [#allocation11], 4
      %s2037 = int_to_ptr.vmem [resolvable:$true] %s2036
      %2042 = dma.vmem_to_hbm [thread:$0]  %s2037, 1024, %s7, [#allocation4], 128, 128, 8
    $region57: #{tpu_custom_call.1} parent=1 // pred_fallthru
      _
    // Predicated region
    $region58: #{tpu_custom_call.1} parent=1 // pred_check
      _
    $region59: #{tpu_custom_call.1} parent=1 // pred_check_branch
      %2044 = sbr.rel (0) target = $region61
    $region60: #{tpu_custom_call.1} parent=1 // pred_region
      %s2046 = ssub.s32 256, 256
      %2047 = vsyncadd [#allocation13], %s2046
      %s2048 = sshll.u32 [#allocation12], 4
      %s2049 = int_to_ptr.vmem [resolvable:$true] %s2048
      %2054 = dma.vmem_to_hbm [thread:$0]  %s2049, 256, %s8, [#allocation13], 128, 128, 8
    $region61: #{tpu_custom_call.1} parent=1 // pred_fallthru
      _
    // Predicated region
    $region62: #{tpu_custom_call.1} parent=1 // pred_check
      _
    $region63: #{tpu_custom_call.1} parent=1 // pred_check_branch
      %2056 = sbr.rel (0) target = $region65
    $region64: #{tpu_custom_call.1} parent=1 // pred_region
      %2057 = dma.done [#allocation4], 1024
    $region65: #{tpu_custom_call.1} parent=1 // pred_fallthru
      _
    // Predicated region
    $region66: #{tpu_custom_call.1} parent=1 // pred_check
      _
    $region67: #{tpu_custom_call.1} parent=1 // pred_check_branch
      %2059 = sbr.rel (0) target = $region69
    $region68: #{tpu_custom_call.1} parent=1 // pred_region
      %2060 = dma.done [#allocation13], 256
    $region69: #{tpu_custom_call.1} parent=1 // pred_fallthru
      _
    %2061 = vsyncpa [#allocation3], 1
    %2062 = vsyncpa [#allocation6], 1
    %2063 = vsyncpa [#allocation9], 1
    %2064 = vsyncpa [#allocation4], 1
    %2065 = vsyncpa [#allocation13], 1

</llo_original>
